<compile_context>
chip_gen: v6e
topology: v6e:2x2x1
jax: 0.10.0
libtpu: 0.0.40
codegen_flags: <defaults>
</compile_context>

<pallas_src>
import functools

import jax
import jax.numpy as jnp
import numpy as np
from jax.experimental import pallas as pl
from jax.experimental.pallas import tpu as pltpu


# ---------------------------------------------------------------------------
# Host-side interpolation-matrix construction (align_corners=True semantics).
# ---------------------------------------------------------------------------
def _interp_matrix_np(out_size: int, in_size: int) -> np.ndarray:
    """Row-stochastic 1-D linear-interpolation matrix, align_corners=True."""
    if out_size == 1:
        src = np.zeros((1,), dtype=np.float64)
    else:
        src = np.arange(out_size, dtype=np.float64) * ((in_size - 1) / (out_size - 1))
    i0 = np.clip(np.floor(src), 0, in_size - 1).astype(np.int64)
    i1 = np.minimum(i0 + 1, in_size - 1)
    frac = src - i0
    w = np.zeros((out_size, in_size), dtype=np.float64)
    rows = np.arange(out_size)
    np.add.at(w, (rows, i0), 1.0 - frac)   # i0 == i1 handled correctly
    np.add.at(w, (rows, i1), frac)
    return w.astype(np.float32)


def _rows_to_terms(a: np.ndarray):
    """Per output row: tuple of (input_index, weight) for the <=2 nonzeros."""
    terms = []
    for t in range(a.shape[0]):
        nz = np.nonzero(a[t])[0]
        terms.append(tuple((int(d), float(a[t, d])) for d in nz))
    return tuple(terms)


def _round_up(v: int, m: int) -> int:
    return ((v + m - 1) // m) * m


# ---------------------------------------------------------------------------
# Kernels
# ---------------------------------------------------------------------------
def _fused_resize_kernel(a_ref, x_ref, o_ref, *, normalize):
    # a_ref: (Ki, Ko_pad) VMEM-resident; x_ref: (Bc, Ki); o_ref: (Bc, Ko_pad).
    # One lane-dense MXU matmul; normalize's *2 already folded into a_ref.
    y = jnp.dot(x_ref[...].astype(a_ref.dtype), a_ref[...],
                preferred_element_type=jnp.float32)
    if normalize:
        y = y - 1.0
    o_ref[...] = y.astype(o_ref.dtype)


def _separable_resize_kernel(a_hw_ref, x_ref, o_ref, *, d_terms, d_first, normalize):
    # a_hw_ref: (Hi*Wi, Ho*Wo) resident (carries the *2 fold when normalizing);
    # x_ref:    (Bc, Di, Hi*Wi); o_ref: (Do, Bc, Ho*Wo).
    # The D contraction uses trace-time constant weights (<=2 nonzeros per output
    # depth), so there are no broadcasts or tiny batched matmuls.
    a_hw = a_hw_ref[...]
    cdt = a_hw.dtype
    if d_first:
        # Depth contraction first (Do <= Di): <=2 VPU weighted adds, then one
        # well-filled (Bc, Hi*Wi) @ (Hi*Wi, Ho*Wo) MXU matmul per output depth.
        for t, terms in enumerate(d_terms):
            z = None
            for d, w in terms:
                xd = x_ref[:, d, :].astype(jnp.float32) * w
                z = xd if z is None else z + xd
            y = jnp.dot(z.astype(cdt), a_hw, preferred_element_type=jnp.float32)
            if normalize:
                y = y - 1.0
            o_ref[t] = y.astype(o_ref.dtype)
    else:
        # (H, W) contraction first (Do > Di): Di matmuls, then <=2 constant-
        # weighted adds per output depth.
        di = x_ref.shape[1]
        ys = [jnp.dot(x_ref[:, d, :].astype(cdt), a_hw,
                      preferred_element_type=jnp.float32) for d in range(di)]
        for t, terms in enumerate(d_terms):
            y = None
            for d, w in terms:
                c = ys[d] * w
                y = c if y is None else y + c
            if normalize:
                y = y - 1.0
            o_ref[t] = y.astype(o_ref.dtype)


# ---------------------------------------------------------------------------
# Budgets & block sizing
# ---------------------------------------------------------------------------
def _tpu_budgets():
    """Generation-aware VMEM budgets (v5e/v6e: 128 MiB; v7x: 64 MiB per TC)."""
    vmem_bytes = 128 * 1024 * 1024
    multi_core = False
    try:
        info = pltpu.get_tpu_info()
        vmem_bytes = int(getattr(info, "vmem_capacity_bytes", vmem_bytes))
        cores = getattr(info, "num_cores", None) or getattr(info, "core_count", None)
        if cores is not None:
            multi_core = int(cores) > 1
        else:
            # v7x-like: 64 MiB VMEM per TensorCore, 2 TCs per chip.
            multi_core = vmem_bytes <= 96 * 1024 * 1024
    except Exception:
        pass
    vmem_limit = max(min(int(vmem_bytes * 0.84), vmem_bytes - (8 << 20)), 32 << 20)
    block_budget = vmem_bytes // 2     # double-buffered x/out blocks + temporaries
    fused_a_limit = vmem_bytes // 5    # resident kron matrix (counted twice below)
    return vmem_limit, block_budget, fused_a_limit, multi_core


def _choose_channel_block(nc, per_channel_bytes, budget_bytes, multi_core,
                          min_tile=8, mxu_tile=256):
    """Pick Bc: as large as the VMEM budget allows, aligned to the MXU M tile."""
    bc = int(max(min_tile, budget_bytes // max(per_channel_bytes, 1)))
    bc = min(bc, 2048, nc)
    if bc < nc:
        # Align the matmul M dim: full MXU tile, then 128, then the sublane tile.
        if bc >= mxu_tile:
            bc = (bc // mxu_tile) * mxu_tile
        elif bc >= 128:
            bc = (bc // 128) * 128
        elif bc >= min_tile:
            bc = (bc // min_tile) * min_tile
        else:
            bc = min(min_tile, nc)
    if multi_core:
        # v7x: aim for >=2 grid steps per TensorCore so the pipeline can hide
        # the shared HBM traffic, but never shrink below one MXU tile of rows.
        while bc > mxu_tile and -(-nc // bc) < 4:
            new_bc = max(mxu_tile, ((bc // 2) // mxu_tile) * mxu_tile)
            if new_bc == bc:
                break
            bc = new_bc
    return max(int(bc), 1)


# ---------------------------------------------------------------------------
# Wrapper
# ---------------------------------------------------------------------------
def resizer_block(x, output_shape, normalize, *,
                  bf16_weights=False,
                  fused_a_bytes_limit=None,
                  channel_block=None):
    """x: (N, C, D, H, W) -> (N, C, *output_shape); trilinear, align_corners=True."""
    if len(output_shape) != 3:
        raise ValueError("Expects output dimension of shape 3 of the format TxWxL")
    N, C, Di, Hi, Wi = x.shape
    Do, Ho, Wo = (int(s) for s in output_shape)
    NC = N * C
    HiWi, HoWo = Hi * Wi, Ho * Wo
    Ki, Ko = Di * HiWi, Do * HoWo

    vmem_limit, block_budget, fused_a_limit, multi_core = _tpu_budgets()
    if fused_a_bytes_limit is None:
        fused_a_bytes_limit = fused_a_limit

    # bf16 inputs (or opt-in flag, e.g. for v7x f32 throughput) use bf16 MXU
    # operands with f32 accumulation; weights are convex so rel error ~1e-3.
    use_bf16 = bf16_weights or (x.dtype == jnp.bfloat16)
    compute_dtype = jnp.bfloat16 if use_bf16 else jnp.float32
    a_item = jnp.dtype(compute_dtype).itemsize
    x_item = jnp.dtype(x.dtype).itemsize
    min_tile = 16 if use_bf16 else 8

    a_d = _interp_matrix_np(Do, Di)
    a_h = _interp_matrix_np(Ho, Hi)
    a_w = _interp_matrix_np(Wo, Wi)

    # Lane-dense fused output: pad Ko to a multiple of 128 (sliced off in wrapper).
    Ko_pad = _round_up(Ko, 128)
    fused_a_bytes = Ki * Ko_pad * a_item

    # Fused vs separable: the fused Kronecker matmul wastes ~max(Di, Do)x MXU
    # flops, acceptable only while the kernel stays HBM-bound.
    ridge_flops_per_byte = 300.0 if use_bf16 else 128.0   # rough MXU/HBM ridge
    fused_intensity = (2.0 * Ki * Ko) / max((Ki + Ko) * x_item, 1)
    flops_ratio = max(Di, Do)
    use_fused = (fused_a_bytes <= fused_a_bytes_limit
                 and (flops_ratio <= 4 or fused_intensity < ridge_flops_per_byte))

    compiler_params = pltpu.CompilerParams(
        dimension_semantics=("parallel",),
        vmem_limit_bytes=vmem_limit,
    )

    if use_fused:
        a_full = np.kron(a_d, np.kron(a_h, a_w)).T            # (Ki, Ko)
        if normalize:
            a_full = a_full * 2.0                              # fold the *2
        if Ko_pad != Ko:
            a_full = np.pad(a_full, ((0, 0), (0, Ko_pad - Ko)))
        a_full = jnp.asarray(a_full, dtype=compute_dtype)

        per_channel = Ki * (2 * x_item + a_item) + Ko_pad * (2 * x_item + 4)
        budget = max(block_budget - 2 * fused_a_bytes, 4 << 20)
        if channel_block is not None:
            Bc = min(int(channel_block), NC)
        else:
            Bc = _choose_channel_block(NC, per_channel, budget, multi_core,
                                       min_tile=min_tile)
        steps = pl.cdiv(NC, Bc)

        xf = x.reshape(NC, Ki)                                 # free reshape
        out = pl.pallas_call(
            functools.partial(_fused_resize_kernel, normalize=normalize),
            out_shape=jax.ShapeDtypeStruct((NC, Ko_pad), x.dtype),
            grid_spec=pltpu.PrefetchScalarGridSpec(
                num_scalar_prefetch=0,
                grid=(steps,),
                in_specs=[
                    pl.BlockSpec((Ki, Ko_pad), lambda i: (0, 0)),   # resident A
                    pl.BlockSpec((Bc, Ki), lambda i: (i, 0)),       # lane-dense x
                ],
                out_specs=pl.BlockSpec((Bc, Ko_pad), lambda i: (i, 0)),
            ),
            compiler_params=compiler_params,
        )(a_full, xf)
        if Ko_pad != Ko:
            out = out[:, :Ko]
        return out.reshape(N, C, Do, Ho, Wo)

    # ----- separable fallback -------------------------------------------------
    # TODO(synk): a fully 3-stage separable path (for H*W planes whose kron(A_h,
    # A_w) matrix does not fit VMEM) is not implemented.
    a_hw_np = np.kron(a_h, a_w).T                              # (Hi*Wi, Ho*Wo)
    if normalize:
        a_hw_np = a_hw_np * 2.0                                # fold the *2 once
    a_hw = jnp.asarray(a_hw_np, dtype=compute_dtype)
    a_hw_bytes = HiWi * HoWo * a_item
    d_terms = _rows_to_terms(a_d)
    d_first = Do <= Di        # put the cheaper axis count on the MXU

    per_channel = (Di * HiWi * (2 * x_item + a_item)
                   + Do * HoWo * 2 * x_item
                   + (1 if d_first else Di) * HoWo * 4
                   + HiWi * 4 + HoWo * 4)
    budget = max(block_budget - 2 * a_hw_bytes, 4 << 20)
    if channel_block is not None:
        Bc = min(int(channel_block), NC)
    else:
        Bc = _choose_channel_block(NC, per_channel, budget, multi_core,
                                   min_tile=min_tile)
    steps = pl.cdiv(NC, Bc)

    xf = x.reshape(NC, Di, HiWi)                               # free reshape
    out = pl.pallas_call(
        functools.partial(_separable_resize_kernel, d_terms=d_terms,
                          d_first=d_first, normalize=normalize),
        out_shape=jax.ShapeDtypeStruct((Do, NC, HoWo), x.dtype),
        grid_spec=pltpu.PrefetchScalarGridSpec(
            num_scalar_prefetch=0,
            grid=(steps,),
            in_specs=[
                pl.BlockSpec((HiWi, HoWo), lambda i: (0, 0)),       # resident A_hw
                pl.BlockSpec((Bc, Di, HiWi), lambda i: (i, 0, 0)),
            ],
            out_specs=pl.BlockSpec((Do, Bc, HoWo), lambda i: (0, i, 0)),
        ),
        compiler_params=compiler_params,
    )(a_hw, xf)
    out = jnp.transpose(out, (1, 0, 2))                        # (NC, Do, Ho*Wo)
    return out.reshape(N, C, Do, Ho, Wo)


# ---------------------------------------------------------------------------
# Plain-JAX reference (same math, no Pallas)
# ---------------------------------------------------------------------------
def _reference(x, output_shape, normalize):
    _, _, Di, Hi, Wi = x.shape
    Do, Ho, Wo = output_shape
    a_d = jnp.asarray(_interp_matrix_np(Do, Di))
    a_h = jnp.asarray(_interp_matrix_np(Ho, Hi))
    a_w = jnp.asarray(_interp_matrix_np(Wo, Wi))
    y = jnp.einsum("td,hi,wj,ncdij->ncthw", a_d, a_h, a_w,
                   x.astype(jnp.float32), precision="highest")
    if normalize:
        y = y * 2.0 - 1.0
    return y.astype(x.dtype)


if __name__ == "__main__":
    key = jax.random.PRNGKey(0)
    k1, k2, k3, k4 = jax.random.split(key, 4)

    def _check(name, y, y_ref, shape):
        assert y.shape == shape, (name, y.shape, shape)
        ok = bool(jnp.allclose(y, y_ref, atol=1e-4, rtol=1e-4))
        assert ok, (name, float(jnp.max(jnp.abs(y - y_ref))))

    out_shape = (4, 8, 8)

    # Case 1: fused Kronecker path, normalize=True (NC = 8, single block).
    x1 = jax.random.normal(k1, (2, 4, 8, 16, 16), dtype=jnp.float32)
    y1 = jax.block_until_ready(resizer_block(x1, out_shape, True))
    _check("fused", y1, _reference(x1, out_shape, True), (2, 4) + out_shape)

    # Case 2: separable fallback (forced), D-first (Do <= Di), NC = 3, no norm.
    x2 = jax.random.normal(k2, (1, 3, 8, 16, 16), dtype=jnp.float32)
    y2 = jax.block_until_ready(
        resizer_block(x2, out_shape, False, fused_a_bytes_limit=0))
    _check("separable_dfirst", y2, _reference(x2, out_shape, False),
           (1, 3) + out_shape)

    # Case 3: fused path with a ragged channel grid (NC = 12, Bc = 8 -> masked
    # edge block reads/writes; validates the no-pad/no-slice path).
    x3 = jax.random.normal(k3, (3, 4, 8, 16, 16), dtype=jnp.float32)
    y3 = jax.block_until_ready(resizer_block(x3, out_shape, True, channel_block=8))
    _check("fused_ragged", y3, _reference(x3, out_shape, True), (3, 4) + out_shape)

    # Case 4: separable fallback, HW-first (Do > Di, depth upsampling).
    out_shape4 = (8, 8, 8)
    x4 = jax.random.normal(k4, (1, 3, 4, 16, 16), dtype=jnp.float32)
    y4 = jax.block_until_ready(
        resizer_block(x4, out_shape4, True, fused_a_bytes_limit=0))
    _check("separable_hwfirst", y4, _reference(x4, out_shape4, True),
           (1, 3) + out_shape4)

    print("KERNEL_OK")
</pallas_src>

<mosaic_0001>
module attributes {stable_mosaic.version = 11 : i64} {
  func.func @_fused_resize_kernel(%arg0: i32, %arg1: memref<2048x256xf32, #tpu.memory_space<vmem>>, %arg2: memref<8x2048xf32, #tpu.memory_space<vmem>>, %arg3: memref<8x256xf32, #tpu.memory_space<vmem>>) attributes {dimension_semantics = [#tpu.dimension_semantics<parallel>], iteration_bounds = array<i64: 1>, scalar_prefetch = 0 : i64, scratch_operands = 0 : i64, tpu.core_type = #tpu.core_type<tc>, window_params = [{pipeline_mode = #tpu.pipeline_mode<synchronous>, transform_indices = @transform_0, window_bounds = array<i64: 2048, 256>}, {transform_indices = @transform_1, window_bounds = array<i64: 8, 2048>}, {transform_indices = @transform_2, window_bounds = array<i64: 8, 256>}]} {
    %c0 = arith.constant 0 : index
    %c0_0 = arith.constant 0 : index
    %0 = vector.load %arg2[%c0, %c0_0] : memref<8x2048xf32, #tpu.memory_space<vmem>>, vector<8x2048xf32>
    %c0_1 = arith.constant 0 : index
    %c0_2 = arith.constant 0 : index
    %1 = vector.load %arg1[%c0_1, %c0_2] : memref<2048x256xf32, #tpu.memory_space<vmem>>, vector<2048x256xf32>
    %cst = arith.constant dense<0.000000e+00> : vector<8x256xf32>
    %2 = tpu.matmul %0, %1, %cst {dimension_numbers = #tpu.dot_dimension_numbers<[1], [0], [0], [1], [0, 0, 1, 1], [], []>} : vector<8x2048xf32>, vector<2048x256xf32>, vector<8x256xf32> -> vector<8x256xf32>
    %cst_3 = arith.constant 1.000000e+00 : f32
    %3 = vector.broadcast %cst_3 : f32 to vector<8x256xf32>
    %4 = arith.subf %2, %3 : vector<8x256xf32>
    %c0_4 = arith.constant 0 : index
    %c0_5 = arith.constant 0 : index
    %5 = vector.load %arg3[%c0_4, %c0_5] : memref<8x256xf32, #tpu.memory_space<vmem>>, vector<8x256xf32>
    tpu.vector_store %arg3[%c0_4, %c0_5], %4 {strides = array<i32>} : memref<8x256xf32, #tpu.memory_space<vmem>>, vector<8x256xf32>,
    return
  }
  func.func @transform_0(%arg0: i32) -> (i32, i32) {
    %c0_i32 = arith.constant 0 : i32
    %c0_i32_0 = arith.constant 0 : i32
    %c0_i32_1 = arith.constant 0 : i32
    return %c0_i32, %c0_i32_0 : i32, i32
  }
  func.func @transform_1(%arg0: i32) -> (i32, i32) {
    %c0_i32 = arith.constant 0 : i32
    %c0_i32_0 = arith.constant 0 : i32
    return %arg0, %c0_i32 : i32, i32
  }
  func.func @transform_2(%arg0: i32) -> (i32, i32) {
    %c0_i32 = arith.constant 0 : i32
    %c0_i32_0 = arith.constant 0 : i32
    return %arg0, %c0_i32 : i32, i32
  }
}

</mosaic_0001>

<llo_original>
// kernel: tpu_custom_call.1
$region0: #{tpu_custom_call.1}
  #allocation0 [shape = 'u32[]', space=smem, size = 0x4, offset = 0x4, fixed_abs, tag = 'smem constant byte address 0x4 - core index']
  #allocation1 [shape = 'u32[144,128]{1,0:T(1,128)}', space=vmem, size = 0x12000, scoped, tag = 'internal scratch']
  %s0 = inlined_call_operand.hbm [shape: f32[2048,256], index: 0, kind: input, shape index: {}]
  %s1 = inlined_call_operand.hbm [shape: f32[8,2048], index: 1, kind: input, shape index: {}]
  %s2 = inlined_call_operand.hbm [shape: f32[8,256], index: 2, kind: output, shape index: {}]
  %s3 = sld [smem:[#allocation0]]
  $region26: #{tpu_custom_call.1} parent=0
    _
  %s5 = ssub.s32 1, %s3
  %s6 = scalar_select 0, %s5, %s3
  $region1: #{tpu_custom_call.1} parent=0
    #allocation2 [shape = 'u8[2097152]{0}', space=vmem, size = 0x200000, scoped, tag = 'input window, operand 0, single buffered']
    #allocation3 [shape = 's32[1]{0}', space=sflag, size = 0x4, scoped, tag = 'scoped memory for tpu_custom_call.1']
    #allocation4 [shape = 's32[1]{0}', space=sflag, size = 0x4, scoped, tag = 'scoped memory for tpu_custom_call.1']
    #allocation5 [shape = 'u8[65536]{0}', space=vmem, size = 0x10000, scoped, tag = 'input window, operand 1, single buffered']
    #allocation6 [shape = 's32[1]{0}', space=sflag, size = 0x4, scoped, tag = 'scoped memory for tpu_custom_call.1']
    #allocation7 [shape = 'u8[8192]{0}', space=vmem, size = 0x2000, scoped, tag = 'output window, operand 0, single buffered']
    %7 = vsyncpa [#allocation3], 0
    %8 = vsyncpa [#allocation6], 0
    %9 = vsyncpa [#allocation4], 0
    // Predicated region
    $region2: #{tpu_custom_call.1} parent=1 // pred_check
      _
    $region3: #{tpu_custom_call.1} parent=1 // pred_check_branch
      %11 = sbr.rel (0) target = $region5
    $region4: #{tpu_custom_call.1} parent=1 // pred_region
      %s13 = ssub.s32 65536, 65536
      %14 = vsyncadd [#allocation3], %s13
      %s15 = sshll.u32 [#allocation2], 4
      %s16 = int_to_ptr.vmem [resolvable:$true] %s15
      %21 = dma.hbm_to_vmem [thread:$0]  %s0, 65536, %s16, [#allocation3], 256, 256, 16
    $region5: #{tpu_custom_call.1} parent=1 // pred_fallthru
      _
    // Predicated region
    $region6: #{tpu_custom_call.1} parent=1 // pred_check
      _
    $region7: #{tpu_custom_call.1} parent=1 // pred_check_branch
      %23 = sbr.rel (0) target = $region9
    $region8: #{tpu_custom_call.1} parent=1 // pred_region
      %s25 = ssub.s32 2048, 2048
      %26 = vsyncadd [#allocation6], %s25
      %s28 = sshll.u32 [#allocation5], 4
      %s29 = int_to_ptr.vmem [resolvable:$true] %s28
      %31 = dma.hbm_to_vmem [thread:$0]  %s1, 2048, %s29, [#allocation6]
    $region9: #{tpu_custom_call.1} parent=1 // pred_fallthru
      _
    // Predicated region
    $region10: #{tpu_custom_call.1} parent=1 // pred_check
      _
    $region11: #{tpu_custom_call.1} parent=1 // pred_check_branch
      %33 = sbr.rel (0) target = $region13
    $region12: #{tpu_custom_call.1} parent=1 // pred_region
      %34 = dma.done [#allocation3], 65536
    $region13: #{tpu_custom_call.1} parent=1 // pred_fallthru
      _
    // Predicated region
    $region14: #{tpu_custom_call.1} parent=1 // pred_check
      _
    $region15: #{tpu_custom_call.1} parent=1 // pred_check_branch
      %36 = sbr.rel (0) target = $region17
    $region16: #{tpu_custom_call.1} parent=1 // pred_region
      %37 = dma.done [#allocation6], 2048
    $region17: #{tpu_custom_call.1} parent=1 // pred_fallthru
      _
    %v38 = vld [vmem:[#allocation5] sm:$0xff]
    %v39 = vld [vmem:[#allocation5 + $0x8] sm:$0xff]
    %v40 = vld [vmem:[#allocation5 + $0x10] sm:$0xff]
    %v41 = vld [vmem:[#allocation5 + $0x18] sm:$0xff]
    %v42 = vld [vmem:[#allocation5 + $0x20] sm:$0xff]
    %v43 = vld [vmem:[#allocation5 + $0x28] sm:$0xff]
    %v44 = vld [vmem:[#allocation5 + $0x30] sm:$0xff]
    %v45 = vld [vmem:[#allocation5 + $0x38] sm:$0xff]
    %v46 = vld [vmem:[#allocation5 + $0x40] sm:$0xff]
    %v47 = vld [vmem:[#allocation5 + $0x48] sm:$0xff]
    %v48 = vld [vmem:[#allocation5 + $0x50] sm:$0xff]
    %v49 = vld [vmem:[#allocation5 + $0x58] sm:$0xff]
    %v50 = vld [vmem:[#allocation5 + $0x60] sm:$0xff]
    %v51 = vld [vmem:[#allocation5 + $0x68] sm:$0xff]
    %v52 = vld [vmem:[#allocation5 + $0x70] sm:$0xff]
    %v53 = vld [vmem:[#allocation5 + $0x78] sm:$0xff]
    %v54 = vld [vmem:[#allocation2] sm:$0xff]
    %v55 = vld [vmem:[#allocation2 + $0x8] sm:$0xff]
    %v56 = vld [vmem:[#allocation2 + $0x10] sm:$0xff]
    %v57 = vld [vmem:[#allocation2 + $0x18] sm:$0xff]
    %v58 = vld [vmem:[#allocation2 + $0x20] sm:$0xff]
    %v59 = vld [vmem:[#allocation2 + $0x28] sm:$0xff]
    %v60 = vld [vmem:[#allocation2 + $0x30] sm:$0xff]
    %v61 = vld [vmem:[#allocation2 + $0x38] sm:$0xff]
    %v62 = vld [vmem:[#allocation2 + $0x40] sm:$0xff]
    %v63 = vld [vmem:[#allocation2 + $0x48] sm:$0xff]
    %v64 = vld [vmem:[#allocation2 + $0x50] sm:$0xff]
    %v65 = vld [vmem:[#allocation2 + $0x58] sm:$0xff]
    %v66 = vld [vmem:[#allocation2 + $0x60] sm:$0xff]
    %v67 = vld [vmem:[#allocation2 + $0x68] sm:$0xff]
    %v68 = vld [vmem:[#allocation2 + $0x70] sm:$0xff]
    %v69 = vld [vmem:[#allocation2 + $0x78] sm:$0xff]
    %v70 = vld [vmem:[#allocation2 + $0x80] sm:$0xff]
    %v71 = vld [vmem:[#allocation2 + $0x88] sm:$0xff]
    %v72 = vld [vmem:[#allocation2 + $0x90] sm:$0xff]
    %v73 = vld [vmem:[#allocation2 + $0x98] sm:$0xff]
    %v74 = vld [vmem:[#allocation2 + $0xa0] sm:$0xff]
    %v75 = vld [vmem:[#allocation2 + $0xa8] sm:$0xff]
    %v76 = vld [vmem:[#allocation2 + $0xb0] sm:$0xff]
    %v77 = vld [vmem:[#allocation2 + $0xb8] sm:$0xff]
    %v78 = vld [vmem:[#allocation2 + $0xc0] sm:$0xff]
    %v79 = vld [vmem:[#allocation2 + $0xc8] sm:$0xff]
    %v80 = vld [vmem:[#allocation2 + $0xd0] sm:$0xff]
    %v81 = vld [vmem:[#allocation2 + $0xd8] sm:$0xff]
    %v82 = vld [vmem:[#allocation2 + $0xe0] sm:$0xff]
    %v83 = vld [vmem:[#allocation2 + $0xe8] sm:$0xff]
    %v84 = vld [vmem:[#allocation2 + $0xf0] sm:$0xff]
    %v85 = vld [vmem:[#allocation2 + $0xf8] sm:$0xff]
    %v86 = vld [vmem:[#allocation2 + $0x100] sm:$0xff]
    %v87 = vld [vmem:[#allocation2 + $0x108] sm:$0xff]
    %v88 = vld [vmem:[#allocation2 + $0x110] sm:$0xff]
    %v89 = vld [vmem:[#allocation2 + $0x118] sm:$0xff]
    %v90 = vld [vmem:[#allocation2 + $0x120] sm:$0xff]
    %v91 = vld [vmem:[#allocation2 + $0x128] sm:$0xff]
    %v92 = vld [vmem:[#allocation2 + $0x130] sm:$0xff]
    %v93 = vld [vmem:[#allocation2 + $0x138] sm:$0xff]
    %v94 = vld [vmem:[#allocation2 + $0x140] sm:$0xff]
    %v95 = vld [vmem:[#allocation2 + $0x148] sm:$0xff]
    %v96 = vld [vmem:[#allocation2 + $0x150] sm:$0xff]
    %v97 = vld [vmem:[#allocation2 + $0x158] sm:$0xff]
    %v98 = vld [vmem:[#allocation2 + $0x160] sm:$0xff]
    %v99 = vld [vmem:[#allocation2 + $0x168] sm:$0xff]
    %v100 = vld [vmem:[#allocation2 + $0x170] sm:$0xff]
    %v101 = vld [vmem:[#allocation2 + $0x178] sm:$0xff]
    %v102 = vld [vmem:[#allocation2 + $0x180] sm:$0xff]
    %v103 = vld [vmem:[#allocation2 + $0x188] sm:$0xff]
    %v104 = vld [vmem:[#allocation2 + $0x190] sm:$0xff]
    %v105 = vld [vmem:[#allocation2 + $0x198] sm:$0xff]
    %v106 = vld [vmem:[#allocation2 + $0x1a0] sm:$0xff]
    %v107 = vld [vmem:[#allocation2 + $0x1a8] sm:$0xff]
    %v108 = vld [vmem:[#allocation2 + $0x1b0] sm:$0xff]
    %v109 = vld [vmem:[#allocation2 + $0x1b8] sm:$0xff]
    %v110 = vld [vmem:[#allocation2 + $0x1c0] sm:$0xff]
    %v111 = vld [vmem:[#allocation2 + $0x1c8] sm:$0xff]
    %v112 = vld [vmem:[#allocation2 + $0x1d0] sm:$0xff]
    %v113 = vld [vmem:[#allocation2 + $0x1d8] sm:$0xff]
    %v114 = vld [vmem:[#allocation2 + $0x1e0] sm:$0xff]
    %v115 = vld [vmem:[#allocation2 + $0x1e8] sm:$0xff]
    %v116 = vld [vmem:[#allocation2 + $0x1f0] sm:$0xff]
    %v117 = vld [vmem:[#allocation2 + $0x1f8] sm:$0xff]
    %v118 = vld [vmem:[#allocation2 + $0x200] sm:$0xff]
    %v119 = vld [vmem:[#allocation2 + $0x208] sm:$0xff]
    %v120 = vld [vmem:[#allocation2 + $0x210] sm:$0xff]
    %v121 = vld [vmem:[#allocation2 + $0x218] sm:$0xff]
    %v122 = vld [vmem:[#allocation2 + $0x220] sm:$0xff]
    %v123 = vld [vmem:[#allocation2 + $0x228] sm:$0xff]
    %v124 = vld [vmem:[#allocation2 + $0x230] sm:$0xff]
    %v125 = vld [vmem:[#allocation2 + $0x238] sm:$0xff]
    %v126 = vld [vmem:[#allocation2 + $0x240] sm:$0xff]
    %v127 = vld [vmem:[#allocation2 + $0x248] sm:$0xff]
    %v128 = vld [vmem:[#allocation2 + $0x250] sm:$0xff]
    %v129 = vld [vmem:[#allocation2 + $0x258] sm:$0xff]
    %v130 = vld [vmem:[#allocation2 + $0x260] sm:$0xff]
    %v131 = vld [vmem:[#allocation2 + $0x268] sm:$0xff]
    %v132 = vld [vmem:[#allocation2 + $0x270] sm:$0xff]
    %v133 = vld [vmem:[#allocation2 + $0x278] sm:$0xff]
    %v134 = vld [vmem:[#allocation2 + $0x280] sm:$0xff]
    %v135 = vld [vmem:[#allocation2 + $0x288] sm:$0xff]
    %v136 = vld [vmem:[#allocation2 + $0x290] sm:$0xff]
    %v137 = vld [vmem:[#allocation2 + $0x298] sm:$0xff]
    %v138 = vld [vmem:[#allocation2 + $0x2a0] sm:$0xff]
    %v139 = vld [vmem:[#allocation2 + $0x2a8] sm:$0xff]
    %v140 = vld [vmem:[#allocation2 + $0x2b0] sm:$0xff]
    %v141 = vld [vmem:[#allocation2 + $0x2b8] sm:$0xff]
    %v142 = vld [vmem:[#allocation2 + $0x2c0] sm:$0xff]
    %v143 = vld [vmem:[#allocation2 + $0x2c8] sm:$0xff]
    %v144 = vld [vmem:[#allocation2 + $0x2d0] sm:$0xff]
    %v145 = vld [vmem:[#allocation2 + $0x2d8] sm:$0xff]
    %v146 = vld [vmem:[#allocation2 + $0x2e0] sm:$0xff]
    %v147 = vld [vmem:[#allocation2 + $0x2e8] sm:$0xff]
    %v148 = vld [vmem:[#allocation2 + $0x2f0] sm:$0xff]
    %v149 = vld [vmem:[#allocation2 + $0x2f8] sm:$0xff]
    %v150 = vld [vmem:[#allocation2 + $0x300] sm:$0xff]
    %v151 = vld [vmem:[#allocation2 + $0x308] sm:$0xff]
    %v152 = vld [vmem:[#allocation2 + $0x310] sm:$0xff]
    %v153 = vld [vmem:[#allocation2 + $0x318] sm:$0xff]
    %v154 = vld [vmem:[#allocation2 + $0x320] sm:$0xff]
    %v155 = vld [vmem:[#allocation2 + $0x328] sm:$0xff]
    %v156 = vld [vmem:[#allocation2 + $0x330] sm:$0xff]
    %v157 = vld [vmem:[#allocation2 + $0x338] sm:$0xff]
    %v158 = vld [vmem:[#allocation2 + $0x340] sm:$0xff]
    %v159 = vld [vmem:[#allocation2 + $0x348] sm:$0xff]
    %v160 = vld [vmem:[#allocation2 + $0x350] sm:$0xff]
    %v161 = vld [vmem:[#allocation2 + $0x358] sm:$0xff]
    %v162 = vld [vmem:[#allocation2 + $0x360] sm:$0xff]
    %v163 = vld [vmem:[#allocation2 + $0x368] sm:$0xff]
    %v164 = vld [vmem:[#allocation2 + $0x370] sm:$0xff]
    %v165 = vld [vmem:[#allocation2 + $0x378] sm:$0xff]
    %v166 = vld [vmem:[#allocation2 + $0x380] sm:$0xff]
    %v167 = vld [vmem:[#allocation2 + $0x388] sm:$0xff]
    %v168 = vld [vmem:[#allocation2 + $0x390] sm:$0xff]
    %v169 = vld [vmem:[#allocation2 + $0x398] sm:$0xff]
    %v170 = vld [vmem:[#allocation2 + $0x3a0] sm:$0xff]
    %v171 = vld [vmem:[#allocation2 + $0x3a8] sm:$0xff]
    %v172 = vld [vmem:[#allocation2 + $0x3b0] sm:$0xff]
    %v173 = vld [vmem:[#allocation2 + $0x3b8] sm:$0xff]
    %v174 = vld [vmem:[#allocation2 + $0x3c0] sm:$0xff]
    %v175 = vld [vmem:[#allocation2 + $0x3c8] sm:$0xff]
    %v176 = vld [vmem:[#allocation2 + $0x3d0] sm:$0xff]
    %v177 = vld [vmem:[#allocation2 + $0x3d8] sm:$0xff]
    %v178 = vld [vmem:[#allocation2 + $0x3e0] sm:$0xff]
    %v179 = vld [vmem:[#allocation2 + $0x3e8] sm:$0xff]
    %v180 = vld [vmem:[#allocation2 + $0x3f0] sm:$0xff]
    %v181 = vld [vmem:[#allocation2 + $0x3f8] sm:$0xff]
    %v182 = vld [vmem:[#allocation2 + $0x400] sm:$0xff]
    %v183 = vld [vmem:[#allocation2 + $0x408] sm:$0xff]
    %v184 = vld [vmem:[#allocation2 + $0x410] sm:$0xff]
    %v185 = vld [vmem:[#allocation2 + $0x418] sm:$0xff]
    %v186 = vld [vmem:[#allocation2 + $0x420] sm:$0xff]
    %v187 = vld [vmem:[#allocation2 + $0x428] sm:$0xff]
    %v188 = vld [vmem:[#allocation2 + $0x430] sm:$0xff]
    %v189 = vld [vmem:[#allocation2 + $0x438] sm:$0xff]
    %v190 = vld [vmem:[#allocation2 + $0x440] sm:$0xff]
    %v191 = vld [vmem:[#allocation2 + $0x448] sm:$0xff]
    %v192 = vld [vmem:[#allocation2 + $0x450] sm:$0xff]
    %v193 = vld [vmem:[#allocation2 + $0x458] sm:$0xff]
    %v194 = vld [vmem:[#allocation2 + $0x460] sm:$0xff]
    %v195 = vld [vmem:[#allocation2 + $0x468] sm:$0xff]
    %v196 = vld [vmem:[#allocation2 + $0x470] sm:$0xff]
    %v197 = vld [vmem:[#allocation2 + $0x478] sm:$0xff]
    %v198 = vld [vmem:[#allocation2 + $0x480] sm:$0xff]
    %v199 = vld [vmem:[#allocation2 + $0x488] sm:$0xff]
    %v200 = vld [vmem:[#allocation2 + $0x490] sm:$0xff]
    %v201 = vld [vmem:[#allocation2 + $0x498] sm:$0xff]
    %v202 = vld [vmem:[#allocation2 + $0x4a0] sm:$0xff]
    %v203 = vld [vmem:[#allocation2 + $0x4a8] sm:$0xff]
    %v204 = vld [vmem:[#allocation2 + $0x4b0] sm:$0xff]
    %v205 = vld [vmem:[#allocation2 + $0x4b8] sm:$0xff]
    %v206 = vld [vmem:[#allocation2 + $0x4c0] sm:$0xff]
    %v207 = vld [vmem:[#allocation2 + $0x4c8] sm:$0xff]
    %v208 = vld [vmem:[#allocation2 + $0x4d0] sm:$0xff]
    %v209 = vld [vmem:[#allocation2 + $0x4d8] sm:$0xff]
    %v210 = vld [vmem:[#allocation2 + $0x4e0] sm:$0xff]
    %v211 = vld [vmem:[#allocation2 + $0x4e8] sm:$0xff]
    %v212 = vld [vmem:[#allocation2 + $0x4f0] sm:$0xff]
    %v213 = vld [vmem:[#allocation2 + $0x4f8] sm:$0xff]
    %v214 = vld [vmem:[#allocation2 + $0x500] sm:$0xff]
    %v215 = vld [vmem:[#allocation2 + $0x508] sm:$0xff]
    %v216 = vld [vmem:[#allocation2 + $0x510] sm:$0xff]
    %v217 = vld [vmem:[#allocation2 + $0x518] sm:$0xff]
    %v218 = vld [vmem:[#allocation2 + $0x520] sm:$0xff]
    %v219 = vld [vmem:[#allocation2 + $0x528] sm:$0xff]
    %v220 = vld [vmem:[#allocation2 + $0x530] sm:$0xff]
    %v221 = vld [vmem:[#allocation2 + $0x538] sm:$0xff]
    %v222 = vld [vmem:[#allocation2 + $0x540] sm:$0xff]
    %v223 = vld [vmem:[#allocation2 + $0x548] sm:$0xff]
    %v224 = vld [vmem:[#allocation2 + $0x550] sm:$0xff]
    %v225 = vld [vmem:[#allocation2 + $0x558] sm:$0xff]
    %v226 = vld [vmem:[#allocation2 + $0x560] sm:$0xff]
    %v227 = vld [vmem:[#allocation2 + $0x568] sm:$0xff]
    %v228 = vld [vmem:[#allocation2 + $0x570] sm:$0xff]
    %v229 = vld [vmem:[#allocation2 + $0x578] sm:$0xff]
    %v230 = vld [vmem:[#allocation2 + $0x580] sm:$0xff]
    %v231 = vld [vmem:[#allocation2 + $0x588] sm:$0xff]
    %v232 = vld [vmem:[#allocation2 + $0x590] sm:$0xff]
    %v233 = vld [vmem:[#allocation2 + $0x598] sm:$0xff]
    %v234 = vld [vmem:[#allocation2 + $0x5a0] sm:$0xff]
    %v235 = vld [vmem:[#allocation2 + $0x5a8] sm:$0xff]
    %v236 = vld [vmem:[#allocation2 + $0x5b0] sm:$0xff]
    %v237 = vld [vmem:[#allocation2 + $0x5b8] sm:$0xff]
    %v238 = vld [vmem:[#allocation2 + $0x5c0] sm:$0xff]
    %v239 = vld [vmem:[#allocation2 + $0x5c8] sm:$0xff]
    %v240 = vld [vmem:[#allocation2 + $0x5d0] sm:$0xff]
    %v241 = vld [vmem:[#allocation2 + $0x5d8] sm:$0xff]
    %v242 = vld [vmem:[#allocation2 + $0x5e0] sm:$0xff]
    %v243 = vld [vmem:[#allocation2 + $0x5e8] sm:$0xff]
    %v244 = vld [vmem:[#allocation2 + $0x5f0] sm:$0xff]
    %v245 = vld [vmem:[#allocation2 + $0x5f8] sm:$0xff]
    %v246 = vld [vmem:[#allocation2 + $0x600] sm:$0xff]
    %v247 = vld [vmem:[#allocation2 + $0x608] sm:$0xff]
    %v248 = vld [vmem:[#allocation2 + $0x610] sm:$0xff]
    %v249 = vld [vmem:[#allocation2 + $0x618] sm:$0xff]
    %v250 = vld [vmem:[#allocation2 + $0x620] sm:$0xff]
    %v251 = vld [vmem:[#allocation2 + $0x628] sm:$0xff]
    %v252 = vld [vmem:[#allocation2 + $0x630] sm:$0xff]
    %v253 = vld [vmem:[#allocation2 + $0x638] sm:$0xff]
    %v254 = vld [vmem:[#allocation2 + $0x640] sm:$0xff]
    %v255 = vld [vmem:[#allocation2 + $0x648] sm:$0xff]
    %v256 = vld [vmem:[#allocation2 + $0x650] sm:$0xff]
    %v257 = vld [vmem:[#allocation2 + $0x658] sm:$0xff]
    %v258 = vld [vmem:[#allocation2 + $0x660] sm:$0xff]
    %v259 = vld [vmem:[#allocation2 + $0x668] sm:$0xff]
    %v260 = vld [vmem:[#allocation2 + $0x670] sm:$0xff]
    %v261 = vld [vmem:[#allocation2 + $0x678] sm:$0xff]
    %v262 = vld [vmem:[#allocation2 + $0x680] sm:$0xff]
    %v263 = vld [vmem:[#allocation2 + $0x688] sm:$0xff]
    %v264 = vld [vmem:[#allocation2 + $0x690] sm:$0xff]
    %v265 = vld [vmem:[#allocation2 + $0x698] sm:$0xff]
    %v266 = vld [vmem:[#allocation2 + $0x6a0] sm:$0xff]
    %v267 = vld [vmem:[#allocation2 + $0x6a8] sm:$0xff]
    %v268 = vld [vmem:[#allocation2 + $0x6b0] sm:$0xff]
    %v269 = vld [vmem:[#allocation2 + $0x6b8] sm:$0xff]
    %v270 = vld [vmem:[#allocation2 + $0x6c0] sm:$0xff]
    %v271 = vld [vmem:[#allocation2 + $0x6c8] sm:$0xff]
    %v272 = vld [vmem:[#allocation2 + $0x6d0] sm:$0xff]
    %v273 = vld [vmem:[#allocation2 + $0x6d8] sm:$0xff]
    %v274 = vld [vmem:[#allocation2 + $0x6e0] sm:$0xff]
    %v275 = vld [vmem:[#allocation2 + $0x6e8] sm:$0xff]
    %v276 = vld [vmem:[#allocation2 + $0x6f0] sm:$0xff]
    %v277 = vld [vmem:[#allocation2 + $0x6f8] sm:$0xff]
    %v278 = vld [vmem:[#allocation2 + $0x700] sm:$0xff]
    %v279 = vld [vmem:[#allocation2 + $0x708] sm:$0xff]
    %v280 = vld [vmem:[#allocation2 + $0x710] sm:$0xff]
    %v281 = vld [vmem:[#allocation2 + $0x718] sm:$0xff]
    %v282 = vld [vmem:[#allocation2 + $0x720] sm:$0xff]
    %v283 = vld [vmem:[#allocation2 + $0x728] sm:$0xff]
    %v284 = vld [vmem:[#allocation2 + $0x730] sm:$0xff]
    %v285 = vld [vmem:[#allocation2 + $0x738] sm:$0xff]
    %v286 = vld [vmem:[#allocation2 + $0x740] sm:$0xff]
    %v287 = vld [vmem:[#allocation2 + $0x748] sm:$0xff]
    %v288 = vld [vmem:[#allocation2 + $0x750] sm:$0xff]
    %v289 = vld [vmem:[#allocation2 + $0x758] sm:$0xff]
    %v290 = vld [vmem:[#allocation2 + $0x760] sm:$0xff]
    %v291 = vld [vmem:[#allocation2 + $0x768] sm:$0xff]
    %v292 = vld [vmem:[#allocation2 + $0x770] sm:$0xff]
    %v293 = vld [vmem:[#allocation2 + $0x778] sm:$0xff]
    %v294 = vld [vmem:[#allocation2 + $0x780] sm:$0xff]
    %v295 = vld [vmem:[#allocation2 + $0x788] sm:$0xff]
    %v296 = vld [vmem:[#allocation2 + $0x790] sm:$0xff]
    %v297 = vld [vmem:[#allocation2 + $0x798] sm:$0xff]
    %v298 = vld [vmem:[#allocation2 + $0x7a0] sm:$0xff]
    %v299 = vld [vmem:[#allocation2 + $0x7a8] sm:$0xff]
    %v300 = vld [vmem:[#allocation2 + $0x7b0] sm:$0xff]
    %v301 = vld [vmem:[#allocation2 + $0x7b8] sm:$0xff]
    %v302 = vld [vmem:[#allocation2 + $0x7c0] sm:$0xff]
    %v303 = vld [vmem:[#allocation2 + $0x7c8] sm:$0xff]
    %v304 = vld [vmem:[#allocation2 + $0x7d0] sm:$0xff]
    %v305 = vld [vmem:[#allocation2 + $0x7d8] sm:$0xff]
    %v306 = vld [vmem:[#allocation2 + $0x7e0] sm:$0xff]
    %v307 = vld [vmem:[#allocation2 + $0x7e8] sm:$0xff]
    %v308 = vld [vmem:[#allocation2 + $0x7f0] sm:$0xff]
    %v309 = vld [vmem:[#allocation2 + $0x7f8] sm:$0xff]
    %v310 = vld [vmem:[#allocation2 + $0x800] sm:$0xff]
    %v311 = vld [vmem:[#allocation2 + $0x808] sm:$0xff]
    %v312 = vld [vmem:[#allocation2 + $0x810] sm:$0xff]
    %v313 = vld [vmem:[#allocation2 + $0x818] sm:$0xff]
    %v314 = vld [vmem:[#allocation2 + $0x820] sm:$0xff]
    %v315 = vld [vmem:[#allocation2 + $0x828] sm:$0xff]
    %v316 = vld [vmem:[#allocation2 + $0x830] sm:$0xff]
    %v317 = vld [vmem:[#allocation2 + $0x838] sm:$0xff]
    %v318 = vld [vmem:[#allocation2 + $0x840] sm:$0xff]
    %v319 = vld [vmem:[#allocation2 + $0x848] sm:$0xff]
    %v320 = vld [vmem:[#allocation2 + $0x850] sm:$0xff]
    %v321 = vld [vmem:[#allocation2 + $0x858] sm:$0xff]
    %v322 = vld [vmem:[#allocation2 + $0x860] sm:$0xff]
    %v323 = vld [vmem:[#allocation2 + $0x868] sm:$0xff]
    %v324 = vld [vmem:[#allocation2 + $0x870] sm:$0xff]
    %v325 = vld [vmem:[#allocation2 + $0x878] sm:$0xff]
    %v326 = vld [vmem:[#allocation2 + $0x880] sm:$0xff]
    %v327 = vld [vmem:[#allocation2 + $0x888] sm:$0xff]
    %v328 = vld [vmem:[#allocation2 + $0x890] sm:$0xff]
    %v329 = vld [vmem:[#allocation2 + $0x898] sm:$0xff]
    %v330 = vld [vmem:[#allocation2 + $0x8a0] sm:$0xff]
    %v331 = vld [vmem:[#allocation2 + $0x8a8] sm:$0xff]
    %v332 = vld [vmem:[#allocation2 + $0x8b0] sm:$0xff]
    %v333 = vld [vmem:[#allocation2 + $0x8b8] sm:$0xff]
    %v334 = vld [vmem:[#allocation2 + $0x8c0] sm:$0xff]
    %v335 = vld [vmem:[#allocation2 + $0x8c8] sm:$0xff]
    %v336 = vld [vmem:[#allocation2 + $0x8d0] sm:$0xff]
    %v337 = vld [vmem:[#allocation2 + $0x8d8] sm:$0xff]
    %v338 = vld [vmem:[#allocation2 + $0x8e0] sm:$0xff]
    %v339 = vld [vmem:[#allocation2 + $0x8e8] sm:$0xff]
    %v340 = vld [vmem:[#allocation2 + $0x8f0] sm:$0xff]
    %v341 = vld [vmem:[#allocation2 + $0x8f8] sm:$0xff]
    %v342 = vld [vmem:[#allocation2 + $0x900] sm:$0xff]
    %v343 = vld [vmem:[#allocation2 + $0x908] sm:$0xff]
    %v344 = vld [vmem:[#allocation2 + $0x910] sm:$0xff]
    %v345 = vld [vmem:[#allocation2 + $0x918] sm:$0xff]
    %v346 = vld [vmem:[#allocation2 + $0x920] sm:$0xff]
    %v347 = vld [vmem:[#allocation2 + $0x928] sm:$0xff]
    %v348 = vld [vmem:[#allocation2 + $0x930] sm:$0xff]
    %v349 = vld [vmem:[#allocation2 + $0x938] sm:$0xff]
    %v350 = vld [vmem:[#allocation2 + $0x940] sm:$0xff]
    %v351 = vld [vmem:[#allocation2 + $0x948] sm:$0xff]
    %v352 = vld [vmem:[#allocation2 + $0x950] sm:$0xff]
    %v353 = vld [vmem:[#allocation2 + $0x958] sm:$0xff]
    %v354 = vld [vmem:[#allocation2 + $0x960] sm:$0xff]
    %v355 = vld [vmem:[#allocation2 + $0x968] sm:$0xff]
    %v356 = vld [vmem:[#allocation2 + $0x970] sm:$0xff]
    %v357 = vld [vmem:[#allocation2 + $0x978] sm:$0xff]
    %v358 = vld [vmem:[#allocation2 + $0x980] sm:$0xff]
    %v359 = vld [vmem:[#allocation2 + $0x988] sm:$0xff]
    %v360 = vld [vmem:[#allocation2 + $0x990] sm:$0xff]
    %v361 = vld [vmem:[#allocation2 + $0x998] sm:$0xff]
    %v362 = vld [vmem:[#allocation2 + $0x9a0] sm:$0xff]
    %v363 = vld [vmem:[#allocation2 + $0x9a8] sm:$0xff]
    %v364 = vld [vmem:[#allocation2 + $0x9b0] sm:$0xff]
    %v365 = vld [vmem:[#allocation2 + $0x9b8] sm:$0xff]
    %v366 = vld [vmem:[#allocation2 + $0x9c0] sm:$0xff]
    %v367 = vld [vmem:[#allocation2 + $0x9c8] sm:$0xff]
    %v368 = vld [vmem:[#allocation2 + $0x9d0] sm:$0xff]
    %v369 = vld [vmem:[#allocation2 + $0x9d8] sm:$0xff]
    %v370 = vld [vmem:[#allocation2 + $0x9e0] sm:$0xff]
    %v371 = vld [vmem:[#allocation2 + $0x9e8] sm:$0xff]
    %v372 = vld [vmem:[#allocation2 + $0x9f0] sm:$0xff]
    %v373 = vld [vmem:[#allocation2 + $0x9f8] sm:$0xff]
    %v374 = vld [vmem:[#allocation2 + $0xa00] sm:$0xff]
    %v375 = vld [vmem:[#allocation2 + $0xa08] sm:$0xff]
    %v376 = vld [vmem:[#allocation2 + $0xa10] sm:$0xff]
    %v377 = vld [vmem:[#allocation2 + $0xa18] sm:$0xff]
    %v378 = vld [vmem:[#allocation2 + $0xa20] sm:$0xff]
    %v379 = vld [vmem:[#allocation2 + $0xa28] sm:$0xff]
    %v380 = vld [vmem:[#allocation2 + $0xa30] sm:$0xff]
    %v381 = vld [vmem:[#allocation2 + $0xa38] sm:$0xff]
    %v382 = vld [vmem:[#allocation2 + $0xa40] sm:$0xff]
    %v383 = vld [vmem:[#allocation2 + $0xa48] sm:$0xff]
    %v384 = vld [vmem:[#allocation2 + $0xa50] sm:$0xff]
    %v385 = vld [vmem:[#allocation2 + $0xa58] sm:$0xff]
    %v386 = vld [vmem:[#allocation2 + $0xa60] sm:$0xff]
    %v387 = vld [vmem:[#allocation2 + $0xa68] sm:$0xff]
    %v388 = vld [vmem:[#allocation2 + $0xa70] sm:$0xff]
    %v389 = vld [vmem:[#allocation2 + $0xa78] sm:$0xff]
    %v390 = vld [vmem:[#allocation2 + $0xa80] sm:$0xff]
    %v391 = vld [vmem:[#allocation2 + $0xa88] sm:$0xff]
    %v392 = vld [vmem:[#allocation2 + $0xa90] sm:$0xff]
    %v393 = vld [vmem:[#allocation2 + $0xa98] sm:$0xff]
    %v394 = vld [vmem:[#allocation2 + $0xaa0] sm:$0xff]
    %v395 = vld [vmem:[#allocation2 + $0xaa8] sm:$0xff]
    %v396 = vld [vmem:[#allocation2 + $0xab0] sm:$0xff]
    %v397 = vld [vmem:[#allocation2 + $0xab8] sm:$0xff]
    %v398 = vld [vmem:[#allocation2 + $0xac0] sm:$0xff]
    %v399 = vld [vmem:[#allocation2 + $0xac8] sm:$0xff]
    %v400 = vld [vmem:[#allocation2 + $0xad0] sm:$0xff]
    %v401 = vld [vmem:[#allocation2 + $0xad8] sm:$0xff]
    %v402 = vld [vmem:[#allocation2 + $0xae0] sm:$0xff]
    %v403 = vld [vmem:[#allocation2 + $0xae8] sm:$0xff]
    %v404 = vld [vmem:[#allocation2 + $0xaf0] sm:$0xff]
    %v405 = vld [vmem:[#allocation2 + $0xaf8] sm:$0xff]
    %v406 = vld [vmem:[#allocation2 + $0xb00] sm:$0xff]
    %v407 = vld [vmem:[#allocation2 + $0xb08] sm:$0xff]
    %v408 = vld [vmem:[#allocation2 + $0xb10] sm:$0xff]
    %v409 = vld [vmem:[#allocation2 + $0xb18] sm:$0xff]
    %v410 = vld [vmem:[#allocation2 + $0xb20] sm:$0xff]
    %v411 = vld [vmem:[#allocation2 + $0xb28] sm:$0xff]
    %v412 = vld [vmem:[#allocation2 + $0xb30] sm:$0xff]
    %v413 = vld [vmem:[#allocation2 + $0xb38] sm:$0xff]
    %v414 = vld [vmem:[#allocation2 + $0xb40] sm:$0xff]
    %v415 = vld [vmem:[#allocation2 + $0xb48] sm:$0xff]
    %v416 = vld [vmem:[#allocation2 + $0xb50] sm:$0xff]
    %v417 = vld [vmem:[#allocation2 + $0xb58] sm:$0xff]
    %v418 = vld [vmem:[#allocation2 + $0xb60] sm:$0xff]
    %v419 = vld [vmem:[#allocation2 + $0xb68] sm:$0xff]
    %v420 = vld [vmem:[#allocation2 + $0xb70] sm:$0xff]
    %v421 = vld [vmem:[#allocation2 + $0xb78] sm:$0xff]
    %v422 = vld [vmem:[#allocation2 + $0xb80] sm:$0xff]
    %v423 = vld [vmem:[#allocation2 + $0xb88] sm:$0xff]
    %v424 = vld [vmem:[#allocation2 + $0xb90] sm:$0xff]
    %v425 = vld [vmem:[#allocation2 + $0xb98] sm:$0xff]
    %v426 = vld [vmem:[#allocation2 + $0xba0] sm:$0xff]
    %v427 = vld [vmem:[#allocation2 + $0xba8] sm:$0xff]
    %v428 = vld [vmem:[#allocation2 + $0xbb0] sm:$0xff]
    %v429 = vld [vmem:[#allocation2 + $0xbb8] sm:$0xff]
    %v430 = vld [vmem:[#allocation2 + $0xbc0] sm:$0xff]
    %v431 = vld [vmem:[#allocation2 + $0xbc8] sm:$0xff]
    %v432 = vld [vmem:[#allocation2 + $0xbd0] sm:$0xff]
    %v433 = vld [vmem:[#allocation2 + $0xbd8] sm:$0xff]
    %v434 = vld [vmem:[#allocation2 + $0xbe0] sm:$0xff]
    %v435 = vld [vmem:[#allocation2 + $0xbe8] sm:$0xff]
    %v436 = vld [vmem:[#allocation2 + $0xbf0] sm:$0xff]
    %v437 = vld [vmem:[#allocation2 + $0xbf8] sm:$0xff]
    %v438 = vld [vmem:[#allocation2 + $0xc00] sm:$0xff]
    %v439 = vld [vmem:[#allocation2 + $0xc08] sm:$0xff]
    %v440 = vld [vmem:[#allocation2 + $0xc10] sm:$0xff]
    %v441 = vld [vmem:[#allocation2 + $0xc18] sm:$0xff]
    %v442 = vld [vmem:[#allocation2 + $0xc20] sm:$0xff]
    %v443 = vld [vmem:[#allocation2 + $0xc28] sm:$0xff]
    %v444 = vld [vmem:[#allocation2 + $0xc30] sm:$0xff]
    %v445 = vld [vmem:[#allocation2 + $0xc38] sm:$0xff]
    %v446 = vld [vmem:[#allocation2 + $0xc40] sm:$0xff]
    %v447 = vld [vmem:[#allocation2 + $0xc48] sm:$0xff]
    %v448 = vld [vmem:[#allocation2 + $0xc50] sm:$0xff]
    %v449 = vld [vmem:[#allocation2 + $0xc58] sm:$0xff]
    %v450 = vld [vmem:[#allocation2 + $0xc60] sm:$0xff]
    %v451 = vld [vmem:[#allocation2 + $0xc68] sm:$0xff]
    %v452 = vld [vmem:[#allocation2 + $0xc70] sm:$0xff]
    %v453 = vld [vmem:[#allocation2 + $0xc78] sm:$0xff]
    %v454 = vld [vmem:[#allocation2 + $0xc80] sm:$0xff]
    %v455 = vld [vmem:[#allocation2 + $0xc88] sm:$0xff]
    %v456 = vld [vmem:[#allocation2 + $0xc90] sm:$0xff]
    %v457 = vld [vmem:[#allocation2 + $0xc98] sm:$0xff]
    %v458 = vld [vmem:[#allocation2 + $0xca0] sm:$0xff]
    %v459 = vld [vmem:[#allocation2 + $0xca8] sm:$0xff]
    %v460 = vld [vmem:[#allocation2 + $0xcb0] sm:$0xff]
    %v461 = vld [vmem:[#allocation2 + $0xcb8] sm:$0xff]
    %v462 = vld [vmem:[#allocation2 + $0xcc0] sm:$0xff]
    %v463 = vld [vmem:[#allocation2 + $0xcc8] sm:$0xff]
    %v464 = vld [vmem:[#allocation2 + $0xcd0] sm:$0xff]
    %v465 = vld [vmem:[#allocation2 + $0xcd8] sm:$0xff]
    %v466 = vld [vmem:[#allocation2 + $0xce0] sm:$0xff]
    %v467 = vld [vmem:[#allocation2 + $0xce8] sm:$0xff]
    %v468 = vld [vmem:[#allocation2 + $0xcf0] sm:$0xff]
    %v469 = vld [vmem:[#allocation2 + $0xcf8] sm:$0xff]
    %v470 = vld [vmem:[#allocation2 + $0xd00] sm:$0xff]
    %v471 = vld [vmem:[#allocation2 + $0xd08] sm:$0xff]
    %v472 = vld [vmem:[#allocation2 + $0xd10] sm:$0xff]
    %v473 = vld [vmem:[#allocation2 + $0xd18] sm:$0xff]
    %v474 = vld [vmem:[#allocation2 + $0xd20] sm:$0xff]
    %v475 = vld [vmem:[#allocation2 + $0xd28] sm:$0xff]
    %v476 = vld [vmem:[#allocation2 + $0xd30] sm:$0xff]
    %v477 = vld [vmem:[#allocation2 + $0xd38] sm:$0xff]
    %v478 = vld [vmem:[#allocation2 + $0xd40] sm:$0xff]
    %v479 = vld [vmem:[#allocation2 + $0xd48] sm:$0xff]
    %v480 = vld [vmem:[#allocation2 + $0xd50] sm:$0xff]
    %v481 = vld [vmem:[#allocation2 + $0xd58] sm:$0xff]
    %v482 = vld [vmem:[#allocation2 + $0xd60] sm:$0xff]
    %v483 = vld [vmem:[#allocation2 + $0xd68] sm:$0xff]
    %v484 = vld [vmem:[#allocation2 + $0xd70] sm:$0xff]
    %v485 = vld [vmem:[#allocation2 + $0xd78] sm:$0xff]
    %v486 = vld [vmem:[#allocation2 + $0xd80] sm:$0xff]
    %v487 = vld [vmem:[#allocation2 + $0xd88] sm:$0xff]
    %v488 = vld [vmem:[#allocation2 + $0xd90] sm:$0xff]
    %v489 = vld [vmem:[#allocation2 + $0xd98] sm:$0xff]
    %v490 = vld [vmem:[#allocation2 + $0xda0] sm:$0xff]
    %v491 = vld [vmem:[#allocation2 + $0xda8] sm:$0xff]
    %v492 = vld [vmem:[#allocation2 + $0xdb0] sm:$0xff]
    %v493 = vld [vmem:[#allocation2 + $0xdb8] sm:$0xff]
    %v494 = vld [vmem:[#allocation2 + $0xdc0] sm:$0xff]
    %v495 = vld [vmem:[#allocation2 + $0xdc8] sm:$0xff]
    %v496 = vld [vmem:[#allocation2 + $0xdd0] sm:$0xff]
    %v497 = vld [vmem:[#allocation2 + $0xdd8] sm:$0xff]
    %v498 = vld [vmem:[#allocation2 + $0xde0] sm:$0xff]
    %v499 = vld [vmem:[#allocation2 + $0xde8] sm:$0xff]
    %v500 = vld [vmem:[#allocation2 + $0xdf0] sm:$0xff]
    %v501 = vld [vmem:[#allocation2 + $0xdf8] sm:$0xff]
    %v502 = vld [vmem:[#allocation2 + $0xe00] sm:$0xff]
    %v503 = vld [vmem:[#allocation2 + $0xe08] sm:$0xff]
    %v504 = vld [vmem:[#allocation2 + $0xe10] sm:$0xff]
    %v505 = vld [vmem:[#allocation2 + $0xe18] sm:$0xff]
    %v506 = vld [vmem:[#allocation2 + $0xe20] sm:$0xff]
    %v507 = vld [vmem:[#allocation2 + $0xe28] sm:$0xff]
    %v508 = vld [vmem:[#allocation2 + $0xe30] sm:$0xff]
    %v509 = vld [vmem:[#allocation2 + $0xe38] sm:$0xff]
    %v510 = vld [vmem:[#allocation2 + $0xe40] sm:$0xff]
    %v511 = vld [vmem:[#allocation2 + $0xe48] sm:$0xff]
    %v512 = vld [vmem:[#allocation2 + $0xe50] sm:$0xff]
    %v513 = vld [vmem:[#allocation2 + $0xe58] sm:$0xff]
    %v514 = vld [vmem:[#allocation2 + $0xe60] sm:$0xff]
    %v515 = vld [vmem:[#allocation2 + $0xe68] sm:$0xff]
    %v516 = vld [vmem:[#allocation2 + $0xe70] sm:$0xff]
    %v517 = vld [vmem:[#allocation2 + $0xe78] sm:$0xff]
    %v518 = vld [vmem:[#allocation2 + $0xe80] sm:$0xff]
    %v519 = vld [vmem:[#allocation2 + $0xe88] sm:$0xff]
    %v520 = vld [vmem:[#allocation2 + $0xe90] sm:$0xff]
    %v521 = vld [vmem:[#allocation2 + $0xe98] sm:$0xff]
    %v522 = vld [vmem:[#allocation2 + $0xea0] sm:$0xff]
    %v523 = vld [vmem:[#allocation2 + $0xea8] sm:$0xff]
    %v524 = vld [vmem:[#allocation2 + $0xeb0] sm:$0xff]
    %v525 = vld [vmem:[#allocation2 + $0xeb8] sm:$0xff]
    %v526 = vld [vmem:[#allocation2 + $0xec0] sm:$0xff]
    %v527 = vld [vmem:[#allocation2 + $0xec8] sm:$0xff]
    %v528 = vld [vmem:[#allocation2 + $0xed0] sm:$0xff]
    %v529 = vld [vmem:[#allocation2 + $0xed8] sm:$0xff]
    %v530 = vld [vmem:[#allocation2 + $0xee0] sm:$0xff]
    %v531 = vld [vmem:[#allocation2 + $0xee8] sm:$0xff]
    %v532 = vld [vmem:[#allocation2 + $0xef0] sm:$0xff]
    %v533 = vld [vmem:[#allocation2 + $0xef8] sm:$0xff]
    %v534 = vld [vmem:[#allocation2 + $0xf00] sm:$0xff]
    %v535 = vld [vmem:[#allocation2 + $0xf08] sm:$0xff]
    %v536 = vld [vmem:[#allocation2 + $0xf10] sm:$0xff]
    %v537 = vld [vmem:[#allocation2 + $0xf18] sm:$0xff]
    %v538 = vld [vmem:[#allocation2 + $0xf20] sm:$0xff]
    %v539 = vld [vmem:[#allocation2 + $0xf28] sm:$0xff]
    %v540 = vld [vmem:[#allocation2 + $0xf30] sm:$0xff]
    %v541 = vld [vmem:[#allocation2 + $0xf38] sm:$0xff]
    %v542 = vld [vmem:[#allocation2 + $0xf40] sm:$0xff]
    %v543 = vld [vmem:[#allocation2 + $0xf48] sm:$0xff]
    %v544 = vld [vmem:[#allocation2 + $0xf50] sm:$0xff]
    %v545 = vld [vmem:[#allocation2 + $0xf58] sm:$0xff]
    %v546 = vld [vmem:[#allocation2 + $0xf60] sm:$0xff]
    %v547 = vld [vmem:[#allocation2 + $0xf68] sm:$0xff]
    %v548 = vld [vmem:[#allocation2 + $0xf70] sm:$0xff]
    %v549 = vld [vmem:[#allocation2 + $0xf78] sm:$0xff]
    %v550 = vld [vmem:[#allocation2 + $0xf80] sm:$0xff]
    %v551 = vld [vmem:[#allocation2 + $0xf88] sm:$0xff]
    %v552 = vld [vmem:[#allocation2 + $0xf90] sm:$0xff]
    %v553 = vld [vmem:[#allocation2 + $0xf98] sm:$0xff]
    %v554 = vld [vmem:[#allocation2 + $0xfa0] sm:$0xff]
    %v555 = vld [vmem:[#allocation2 + $0xfa8] sm:$0xff]
    %v556 = vld [vmem:[#allocation2 + $0xfb0] sm:$0xff]
    %v557 = vld [vmem:[#allocation2 + $0xfb8] sm:$0xff]
    %v558 = vld [vmem:[#allocation2 + $0xfc0] sm:$0xff]
    %v559 = vld [vmem:[#allocation2 + $0xfc8] sm:$0xff]
    %v560 = vld [vmem:[#allocation2 + $0xfd0] sm:$0xff]
    %v561 = vld [vmem:[#allocation2 + $0xfd8] sm:$0xff]
    %v562 = vld [vmem:[#allocation2 + $0xfe0] sm:$0xff]
    %v563 = vld [vmem:[#allocation2 + $0xfe8] sm:$0xff]
    %v564 = vld [vmem:[#allocation2 + $0xff0] sm:$0xff]
    %v565 = vld [vmem:[#allocation2 + $0xff8] sm:$0xff]
    %566 = vmatprep.subr.mxu0 %v85
    %567 = vmatpush1.msra.mxu0 %v84
    %568 = vmatprep.subr.mxu0 %v83
    %569 = vmatpush1.msra.mxu0 %v82
    %570 = vmatprep.subr.mxu0 %v81
    %571 = vmatpush1.msra.mxu0 %v80
    %572 = vmatprep.subr.mxu0 %v79
    %573 = vmatpush1.msra.mxu0 %v78
    %574 = vmatprep.subr.mxu0 %v77
    %575 = vmatpush1.msra.mxu0 %v76
    %576 = vmatprep.subr.mxu0 %v75
    %577 = vmatpush1.msra.mxu0 %v74
    %578 = vmatprep.subr.mxu0 %v73
    %579 = vmatpush1.msra.mxu0 %v72
    %580 = vmatprep.subr.mxu0 %v71
    %581 = vmatpush1.msra.mxu0 %v70
    %582 = vmatprep.subr.mxu0 %v69
    %583 = vmatpush1.msra.mxu0 %v68
    %584 = vmatprep.subr.mxu0 %v67
    %585 = vmatpush1.msra.mxu0 %v66
    %586 = vmatprep.subr.mxu0 %v65
    %587 = vmatpush1.msra.mxu0 %v64
    %588 = vmatprep.subr.mxu0 %v63
    %589 = vmatpush1.msra.mxu0 %v62
    %590 = vmatprep.subr.mxu0 %v61
    %591 = vmatpush1.msra.mxu0 %v60
    %592 = vmatprep.subr.mxu0 %v59
    %593 = vmatpush1.msra.mxu0 %v58
    %594 = vmatprep.subr.mxu0 %v57
    %595 = vmatpush1.msra.mxu0 %v56
    %596 = vmatprep.subr.mxu0 %v55
    %597 = vmatpush1.msra.mxu0 %v54
    %598 = vmatprep.subr.mxu0 %v117
    %599 = vmatpush2.msra.mxu0 %v116
    %600 = vmatprep.subr.mxu0 %v115
    %601 = vmatpush2.msra.mxu0 %v114
    %602 = vmatprep.subr.mxu0 %v113
    %603 = vmatpush2.msra.mxu0 %v112
    %604 = vmatprep.subr.mxu0 %v111
    %605 = vmatpush2.msra.mxu0 %v110
    %606 = vmatprep.subr.mxu0 %v109
    %607 = vmatpush2.msra.mxu0 %v108
    %608 = vmatprep.subr.mxu0 %v107
    %609 = vmatpush2.msra.mxu0 %v106
    %610 = vmatprep.subr.mxu0 %v105
    %611 = vmatpush2.msra.mxu0 %v104
    %612 = vmatprep.subr.mxu0 %v103
    %613 = vmatpush2.msra.mxu0 %v102
    %614 = vmatprep.subr.mxu0 %v101
    %615 = vmatpush2.msra.mxu0 %v100
    %616 = vmatprep.subr.mxu0 %v99
    %617 = vmatpush2.msra.mxu0 %v98
    %618 = vmatprep.subr.mxu0 %v97
    %619 = vmatpush2.msra.mxu0 %v96
    %620 = vmatprep.subr.mxu0 %v95
    %621 = vmatpush2.msra.mxu0 %v94
    %622 = vmatprep.subr.mxu0 %v93
    %623 = vmatpush2.msra.mxu0 %v92
    %624 = vmatprep.subr.mxu0 %v91
    %625 = vmatpush2.msra.mxu0 %v90
    %626 = vmatprep.subr.mxu0 %v89
    %627 = vmatpush2.msra.mxu0 %v88
    %628 = vmatprep.subr.mxu0 %v87
    %629 = vmatpush2.msra.mxu0 %v86
    %630 = vmatprep.mubr.f32.mxu0 %v39
    %631 = vmatmul.mubr.f32.gmra.mxu0 %v38
    %v632 = vpop.f32.mrf.mxu0
    %v633 = vadd.f32 0.0, %v632
    %v634 = vpop.f32.mrf.mxu0
    %v635 = vadd.f32 0.0, %v634
    %636 = vdwg.mxu0
    %637 = vmatprep.subr.mxu0 %v149
    %638 = vmatpush1.msra.mxu0 %v148
    %639 = vmatprep.subr.mxu0 %v147
    %640 = vmatpush1.msra.mxu0 %v146
    %641 = vmatprep.subr.mxu0 %v145
    %642 = vmatpush1.msra.mxu0 %v144
    %643 = vmatprep.subr.mxu0 %v143
    %644 = vmatpush1.msra.mxu0 %v142
    %645 = vmatprep.subr.mxu0 %v141
    %646 = vmatpush1.msra.mxu0 %v140
    %647 = vmatprep.subr.mxu0 %v139
    %648 = vmatpush1.msra.mxu0 %v138
    %649 = vmatprep.subr.mxu0 %v137
    %650 = vmatpush1.msra.mxu0 %v136
    %651 = vmatprep.subr.mxu0 %v135
    %652 = vmatpush1.msra.mxu0 %v134
    %653 = vmatprep.subr.mxu0 %v133
    %654 = vmatpush1.msra.mxu0 %v132
    %655 = vmatprep.subr.mxu0 %v131
    %656 = vmatpush1.msra.mxu0 %v130
    %657 = vmatprep.subr.mxu0 %v129
    %658 = vmatpush1.msra.mxu0 %v128
    %659 = vmatprep.subr.mxu0 %v127
    %660 = vmatpush1.msra.mxu0 %v126
    %661 = vmatprep.subr.mxu0 %v125
    %662 = vmatpush1.msra.mxu0 %v124
    %663 = vmatprep.subr.mxu0 %v123
    %664 = vmatpush1.msra.mxu0 %v122
    %665 = vmatprep.subr.mxu0 %v121
    %666 = vmatpush1.msra.mxu0 %v120
    %667 = vmatprep.subr.mxu0 %v119
    %668 = vmatpush1.msra.mxu0 %v118
    %669 = vmatprep.subr.mxu0 %v181
    %670 = vmatpush2.msra.mxu0 %v180
    %671 = vmatprep.subr.mxu0 %v179
    %672 = vmatpush2.msra.mxu0 %v178
    %673 = vmatprep.subr.mxu0 %v177
    %674 = vmatpush2.msra.mxu0 %v176
    %675 = vmatprep.subr.mxu0 %v175
    %676 = vmatpush2.msra.mxu0 %v174
    %677 = vmatprep.subr.mxu0 %v173
    %678 = vmatpush2.msra.mxu0 %v172
    %679 = vmatprep.subr.mxu0 %v171
    %680 = vmatpush2.msra.mxu0 %v170
    %681 = vmatprep.subr.mxu0 %v169
    %682 = vmatpush2.msra.mxu0 %v168
    %683 = vmatprep.subr.mxu0 %v167
    %684 = vmatpush2.msra.mxu0 %v166
    %685 = vmatprep.subr.mxu0 %v165
    %686 = vmatpush2.msra.mxu0 %v164
    %687 = vmatprep.subr.mxu0 %v163
    %688 = vmatpush2.msra.mxu0 %v162
    %689 = vmatprep.subr.mxu0 %v161
    %690 = vmatpush2.msra.mxu0 %v160
    %691 = vmatprep.subr.mxu0 %v159
    %692 = vmatpush2.msra.mxu0 %v158
    %693 = vmatprep.subr.mxu0 %v157
    %694 = vmatpush2.msra.mxu0 %v156
    %695 = vmatprep.subr.mxu0 %v155
    %696 = vmatpush2.msra.mxu0 %v154
    %697 = vmatprep.subr.mxu0 %v153
    %698 = vmatpush2.msra.mxu0 %v152
    %699 = vmatprep.subr.mxu0 %v151
    %700 = vmatpush2.msra.mxu0 %v150
    %701 = vmatprep.mubr.f32.mxu0 %v41
    %702 = vmatmul.mubr.f32.gmra.mxu0 %v40
    %v703 = vpop.f32.mrf.mxu0
    %v704 = vadd.f32 %v633, %v703
    %v705 = vpop.f32.mrf.mxu0
    %v706 = vadd.f32 %v635, %v705
    %707 = vdwg.mxu0
    %708 = vmatprep.subr.mxu0 %v213
    %709 = vmatpush1.msra.mxu0 %v212
    %710 = vmatprep.subr.mxu0 %v211
    %711 = vmatpush1.msra.mxu0 %v210
    %712 = vmatprep.subr.mxu0 %v209
    %713 = vmatpush1.msra.mxu0 %v208
    %714 = vmatprep.subr.mxu0 %v207
    %715 = vmatpush1.msra.mxu0 %v206
    %716 = vmatprep.subr.mxu0 %v205
    %717 = vmatpush1.msra.mxu0 %v204
    %718 = vmatprep.subr.mxu0 %v203
    %719 = vmatpush1.msra.mxu0 %v202
    %720 = vmatprep.subr.mxu0 %v201
    %721 = vmatpush1.msra.mxu0 %v200
    %722 = vmatprep.subr.mxu0 %v199
    %723 = vmatpush1.msra.mxu0 %v198
    %724 = vmatprep.subr.mxu0 %v197
    %725 = vmatpush1.msra.mxu0 %v196
    %726 = vmatprep.subr.mxu0 %v195
    %727 = vmatpush1.msra.mxu0 %v194
    %728 = vmatprep.subr.mxu0 %v193
    %729 = vmatpush1.msra.mxu0 %v192
    %730 = vmatprep.subr.mxu0 %v191
    %731 = vmatpush1.msra.mxu0 %v190
    %732 = vmatprep.subr.mxu0 %v189
    %733 = vmatpush1.msra.mxu0 %v188
    %734 = vmatprep.subr.mxu0 %v187
    %735 = vmatpush1.msra.mxu0 %v186
    %736 = vmatprep.subr.mxu0 %v185
    %737 = vmatpush1.msra.mxu0 %v184
    %738 = vmatprep.subr.mxu0 %v183
    %739 = vmatpush1.msra.mxu0 %v182
    %740 = vmatprep.subr.mxu0 %v245
    %741 = vmatpush2.msra.mxu0 %v244
    %742 = vmatprep.subr.mxu0 %v243
    %743 = vmatpush2.msra.mxu0 %v242
    %744 = vmatprep.subr.mxu0 %v241
    %745 = vmatpush2.msra.mxu0 %v240
    %746 = vmatprep.subr.mxu0 %v239
    %747 = vmatpush2.msra.mxu0 %v238
    %748 = vmatprep.subr.mxu0 %v237
    %749 = vmatpush2.msra.mxu0 %v236
    %750 = vmatprep.subr.mxu0 %v235
    %751 = vmatpush2.msra.mxu0 %v234
    %752 = vmatprep.subr.mxu0 %v233
    %753 = vmatpush2.msra.mxu0 %v232
    %754 = vmatprep.subr.mxu0 %v231
    %755 = vmatpush2.msra.mxu0 %v230
    %756 = vmatprep.subr.mxu0 %v229
    %757 = vmatpush2.msra.mxu0 %v228
    %758 = vmatprep.subr.mxu0 %v227
    %759 = vmatpush2.msra.mxu0 %v226
    %760 = vmatprep.subr.mxu0 %v225
    %761 = vmatpush2.msra.mxu0 %v224
    %762 = vmatprep.subr.mxu0 %v223
    %763 = vmatpush2.msra.mxu0 %v222
    %764 = vmatprep.subr.mxu0 %v221
    %765 = vmatpush2.msra.mxu0 %v220
    %766 = vmatprep.subr.mxu0 %v219
    %767 = vmatpush2.msra.mxu0 %v218
    %768 = vmatprep.subr.mxu0 %v217
    %769 = vmatpush2.msra.mxu0 %v216
    %770 = vmatprep.subr.mxu0 %v215
    %771 = vmatpush2.msra.mxu0 %v214
    %772 = vmatprep.mubr.f32.mxu0 %v43
    %773 = vmatmul.mubr.f32.gmra.mxu0 %v42
    %v774 = vpop.f32.mrf.mxu0
    %v775 = vadd.f32 %v704, %v774
    %v776 = vpop.f32.mrf.mxu0
    %v777 = vadd.f32 %v706, %v776
    %778 = vdwg.mxu0
    %779 = vmatprep.subr.mxu0 %v277
    %780 = vmatpush1.msra.mxu0 %v276
    %781 = vmatprep.subr.mxu0 %v275
    %782 = vmatpush1.msra.mxu0 %v274
    %783 = vmatprep.subr.mxu0 %v273
    %784 = vmatpush1.msra.mxu0 %v272
    %785 = vmatprep.subr.mxu0 %v271
    %786 = vmatpush1.msra.mxu0 %v270
    %787 = vmatprep.subr.mxu0 %v269
    %788 = vmatpush1.msra.mxu0 %v268
    %789 = vmatprep.subr.mxu0 %v267
    %790 = vmatpush1.msra.mxu0 %v266
    %791 = vmatprep.subr.mxu0 %v265
    %792 = vmatpush1.msra.mxu0 %v264
    %793 = vmatprep.subr.mxu0 %v263
    %794 = vmatpush1.msra.mxu0 %v262
    %795 = vmatprep.subr.mxu0 %v261
    %796 = vmatpush1.msra.mxu0 %v260
    %797 = vmatprep.subr.mxu0 %v259
    %798 = vmatpush1.msra.mxu0 %v258
    %799 = vmatprep.subr.mxu0 %v257
    %800 = vmatpush1.msra.mxu0 %v256
    %801 = vmatprep.subr.mxu0 %v255
    %802 = vmatpush1.msra.mxu0 %v254
    %803 = vmatprep.subr.mxu0 %v253
    %804 = vmatpush1.msra.mxu0 %v252
    %805 = vmatprep.subr.mxu0 %v251
    %806 = vmatpush1.msra.mxu0 %v250
    %807 = vmatprep.subr.mxu0 %v249
    %808 = vmatpush1.msra.mxu0 %v248
    %809 = vmatprep.subr.mxu0 %v247
    %810 = vmatpush1.msra.mxu0 %v246
    %811 = vmatprep.subr.mxu0 %v309
    %812 = vmatpush2.msra.mxu0 %v308
    %813 = vmatprep.subr.mxu0 %v307
    %814 = vmatpush2.msra.mxu0 %v306
    %815 = vmatprep.subr.mxu0 %v305
    %816 = vmatpush2.msra.mxu0 %v304
    %817 = vmatprep.subr.mxu0 %v303
    %818 = vmatpush2.msra.mxu0 %v302
    %819 = vmatprep.subr.mxu0 %v301
    %820 = vmatpush2.msra.mxu0 %v300
    %821 = vmatprep.subr.mxu0 %v299
    %822 = vmatpush2.msra.mxu0 %v298
    %823 = vmatprep.subr.mxu0 %v297
    %824 = vmatpush2.msra.mxu0 %v296
    %825 = vmatprep.subr.mxu0 %v295
    %826 = vmatpush2.msra.mxu0 %v294
    %827 = vmatprep.subr.mxu0 %v293
    %828 = vmatpush2.msra.mxu0 %v292
    %829 = vmatprep.subr.mxu0 %v291
    %830 = vmatpush2.msra.mxu0 %v290
    %831 = vmatprep.subr.mxu0 %v289
    %832 = vmatpush2.msra.mxu0 %v288
    %833 = vmatprep.subr.mxu0 %v287
    %834 = vmatpush2.msra.mxu0 %v286
    %835 = vmatprep.subr.mxu0 %v285
    %836 = vmatpush2.msra.mxu0 %v284
    %837 = vmatprep.subr.mxu0 %v283
    %838 = vmatpush2.msra.mxu0 %v282
    %839 = vmatprep.subr.mxu0 %v281
    %840 = vmatpush2.msra.mxu0 %v280
    %841 = vmatprep.subr.mxu0 %v279
    %842 = vmatpush2.msra.mxu0 %v278
    %843 = vmatprep.mubr.f32.mxu0 %v45
    %844 = vmatmul.mubr.f32.gmra.mxu0 %v44
    %v845 = vpop.f32.mrf.mxu0
    %v846 = vadd.f32 %v775, %v845
    %v847 = vpop.f32.mrf.mxu0
    %v848 = vadd.f32 %v777, %v847
    %849 = vdwg.mxu0
    %850 = vmatprep.subr.mxu0 %v341
    %851 = vmatpush1.msra.mxu0 %v340
    %852 = vmatprep.subr.mxu0 %v339
    %853 = vmatpush1.msra.mxu0 %v338
    %854 = vmatprep.subr.mxu0 %v337
    %855 = vmatpush1.msra.mxu0 %v336
    %856 = vmatprep.subr.mxu0 %v335
    %857 = vmatpush1.msra.mxu0 %v334
    %858 = vmatprep.subr.mxu0 %v333
    %859 = vmatpush1.msra.mxu0 %v332
    %860 = vmatprep.subr.mxu0 %v331
    %861 = vmatpush1.msra.mxu0 %v330
    %862 = vmatprep.subr.mxu0 %v329
    %863 = vmatpush1.msra.mxu0 %v328
    %864 = vmatprep.subr.mxu0 %v327
    %865 = vmatpush1.msra.mxu0 %v326
    %866 = vmatprep.subr.mxu0 %v325
    %867 = vmatpush1.msra.mxu0 %v324
    %868 = vmatprep.subr.mxu0 %v323
    %869 = vmatpush1.msra.mxu0 %v322
    %870 = vmatprep.subr.mxu0 %v321
    %871 = vmatpush1.msra.mxu0 %v320
    %872 = vmatprep.subr.mxu0 %v319
    %873 = vmatpush1.msra.mxu0 %v318
    %874 = vmatprep.subr.mxu0 %v317
    %875 = vmatpush1.msra.mxu0 %v316
    %876 = vmatprep.subr.mxu0 %v315
    %877 = vmatpush1.msra.mxu0 %v314
    %878 = vmatprep.subr.mxu0 %v313
    %879 = vmatpush1.msra.mxu0 %v312
    %880 = vmatprep.subr.mxu0 %v311
    %881 = vmatpush1.msra.mxu0 %v310
    %882 = vmatprep.subr.mxu0 %v373
    %883 = vmatpush2.msra.mxu0 %v372
    %884 = vmatprep.subr.mxu0 %v371
    %885 = vmatpush2.msra.mxu0 %v370
    %886 = vmatprep.subr.mxu0 %v369
    %887 = vmatpush2.msra.mxu0 %v368
    %888 = vmatprep.subr.mxu0 %v367
    %889 = vmatpush2.msra.mxu0 %v366
    %890 = vmatprep.subr.mxu0 %v365
    %891 = vmatpush2.msra.mxu0 %v364
    %892 = vmatprep.subr.mxu0 %v363
    %893 = vmatpush2.msra.mxu0 %v362
    %894 = vmatprep.subr.mxu0 %v361
    %895 = vmatpush2.msra.mxu0 %v360
    %896 = vmatprep.subr.mxu0 %v359
    %897 = vmatpush2.msra.mxu0 %v358
    %898 = vmatprep.subr.mxu0 %v357
    %899 = vmatpush2.msra.mxu0 %v356
    %900 = vmatprep.subr.mxu0 %v355
    %901 = vmatpush2.msra.mxu0 %v354
    %902 = vmatprep.subr.mxu0 %v353
    %903 = vmatpush2.msra.mxu0 %v352
    %904 = vmatprep.subr.mxu0 %v351
    %905 = vmatpush2.msra.mxu0 %v350
    %906 = vmatprep.subr.mxu0 %v349
    %907 = vmatpush2.msra.mxu0 %v348
    %908 = vmatprep.subr.mxu0 %v347
    %909 = vmatpush2.msra.mxu0 %v346
    %910 = vmatprep.subr.mxu0 %v345
    %911 = vmatpush2.msra.mxu0 %v344
    %912 = vmatprep.subr.mxu0 %v343
    %913 = vmatpush2.msra.mxu0 %v342
    %914 = vmatprep.mubr.f32.mxu0 %v47
    %915 = vmatmul.mubr.f32.gmra.mxu0 %v46
    %v916 = vpop.f32.mrf.mxu0
    %v917 = vadd.f32 %v846, %v916
    %v918 = vpop.f32.mrf.mxu0
    %v919 = vadd.f32 %v848, %v918
    %920 = vdwg.mxu0
    %921 = vmatprep.subr.mxu0 %v405
    %922 = vmatpush1.msra.mxu0 %v404
    %923 = vmatprep.subr.mxu0 %v403
    %924 = vmatpush1.msra.mxu0 %v402
    %925 = vmatprep.subr.mxu0 %v401
    %926 = vmatpush1.msra.mxu0 %v400
    %927 = vmatprep.subr.mxu0 %v399
    %928 = vmatpush1.msra.mxu0 %v398
    %929 = vmatprep.subr.mxu0 %v397
    %930 = vmatpush1.msra.mxu0 %v396
    %931 = vmatprep.subr.mxu0 %v395
    %932 = vmatpush1.msra.mxu0 %v394
    %933 = vmatprep.subr.mxu0 %v393
    %934 = vmatpush1.msra.mxu0 %v392
    %935 = vmatprep.subr.mxu0 %v391
    %936 = vmatpush1.msra.mxu0 %v390
    %937 = vmatprep.subr.mxu0 %v389
    %938 = vmatpush1.msra.mxu0 %v388
    %939 = vmatprep.subr.mxu0 %v387
    %940 = vmatpush1.msra.mxu0 %v386
    %941 = vmatprep.subr.mxu0 %v385
    %942 = vmatpush1.msra.mxu0 %v384
    %943 = vmatprep.subr.mxu0 %v383
    %944 = vmatpush1.msra.mxu0 %v382
    %945 = vmatprep.subr.mxu0 %v381
    %946 = vmatpush1.msra.mxu0 %v380
    %947 = vmatprep.subr.mxu0 %v379
    %948 = vmatpush1.msra.mxu0 %v378
    %949 = vmatprep.subr.mxu0 %v377
    %950 = vmatpush1.msra.mxu0 %v376
    %951 = vmatprep.subr.mxu0 %v375
    %952 = vmatpush1.msra.mxu0 %v374
    %953 = vmatprep.subr.mxu0 %v437
    %954 = vmatpush2.msra.mxu0 %v436
    %955 = vmatprep.subr.mxu0 %v435
    %956 = vmatpush2.msra.mxu0 %v434
    %957 = vmatprep.subr.mxu0 %v433
    %958 = vmatpush2.msra.mxu0 %v432
    %959 = vmatprep.subr.mxu0 %v431
    %960 = vmatpush2.msra.mxu0 %v430
    %961 = vmatprep.subr.mxu0 %v429
    %962 = vmatpush2.msra.mxu0 %v428
    %963 = vmatprep.subr.mxu0 %v427
    %964 = vmatpush2.msra.mxu0 %v426
    %965 = vmatprep.subr.mxu0 %v425
    %966 = vmatpush2.msra.mxu0 %v424
    %967 = vmatprep.subr.mxu0 %v423
    %968 = vmatpush2.msra.mxu0 %v422
    %969 = vmatprep.subr.mxu0 %v421
    %970 = vmatpush2.msra.mxu0 %v420
    %971 = vmatprep.subr.mxu0 %v419
    %972 = vmatpush2.msra.mxu0 %v418
    %973 = vmatprep.subr.mxu0 %v417
    %974 = vmatpush2.msra.mxu0 %v416
    %975 = vmatprep.subr.mxu0 %v415
    %976 = vmatpush2.msra.mxu0 %v414
    %977 = vmatprep.subr.mxu0 %v413
    %978 = vmatpush2.msra.mxu0 %v412
    %979 = vmatprep.subr.mxu0 %v411
    %980 = vmatpush2.msra.mxu0 %v410
    %981 = vmatprep.subr.mxu0 %v409
    %982 = vmatpush2.msra.mxu0 %v408
    %983 = vmatprep.subr.mxu0 %v407
    %984 = vmatpush2.msra.mxu0 %v406
    %985 = vmatprep.mubr.f32.mxu0 %v49
    %986 = vmatmul.mubr.f32.gmra.mxu0 %v48
    %v987 = vpop.f32.mrf.mxu0
    %v988 = vadd.f32 %v917, %v987
    %v989 = vpop.f32.mrf.mxu0
    %v990 = vadd.f32 %v919, %v989
    %991 = vdwg.mxu0
    %992 = vmatprep.subr.mxu0 %v469
    %993 = vmatpush1.msra.mxu0 %v468
    %994 = vmatprep.subr.mxu0 %v467
    %995 = vmatpush1.msra.mxu0 %v466
    %996 = vmatprep.subr.mxu0 %v465
    %997 = vmatpush1.msra.mxu0 %v464
    %998 = vmatprep.subr.mxu0 %v463
    %999 = vmatpush1.msra.mxu0 %v462
    %1000 = vmatprep.subr.mxu0 %v461
    %1001 = vmatpush1.msra.mxu0 %v460
    %1002 = vmatprep.subr.mxu0 %v459
    %1003 = vmatpush1.msra.mxu0 %v458
    %1004 = vmatprep.subr.mxu0 %v457
    %1005 = vmatpush1.msra.mxu0 %v456
    %1006 = vmatprep.subr.mxu0 %v455
    %1007 = vmatpush1.msra.mxu0 %v454
    %1008 = vmatprep.subr.mxu0 %v453
    %1009 = vmatpush1.msra.mxu0 %v452
    %1010 = vmatprep.subr.mxu0 %v451
    %1011 = vmatpush1.msra.mxu0 %v450
    %1012 = vmatprep.subr.mxu0 %v449
    %1013 = vmatpush1.msra.mxu0 %v448
    %1014 = vmatprep.subr.mxu0 %v447
    %1015 = vmatpush1.msra.mxu0 %v446
    %1016 = vmatprep.subr.mxu0 %v445
    %1017 = vmatpush1.msra.mxu0 %v444
    %1018 = vmatprep.subr.mxu0 %v443
    %1019 = vmatpush1.msra.mxu0 %v442
    %1020 = vmatprep.subr.mxu0 %v441
    %1021 = vmatpush1.msra.mxu0 %v440
    %1022 = vmatprep.subr.mxu0 %v439
    %1023 = vmatpush1.msra.mxu0 %v438
    %1024 = vmatprep.subr.mxu0 %v501
    %1025 = vmatpush2.msra.mxu0 %v500
    %1026 = vmatprep.subr.mxu0 %v499
    %1027 = vmatpush2.msra.mxu0 %v498
    %1028 = vmatprep.subr.mxu0 %v497
    %1029 = vmatpush2.msra.mxu0 %v496
    %1030 = vmatprep.subr.mxu0 %v495
    %1031 = vmatpush2.msra.mxu0 %v494
    %1032 = vmatprep.subr.mxu0 %v493
    %1033 = vmatpush2.msra.mxu0 %v492
    %1034 = vmatprep.subr.mxu0 %v491
    %1035 = vmatpush2.msra.mxu0 %v490
    %1036 = vmatprep.subr.mxu0 %v489
    %1037 = vmatpush2.msra.mxu0 %v488
    %1038 = vmatprep.subr.mxu0 %v487
    %1039 = vmatpush2.msra.mxu0 %v486
    %1040 = vmatprep.subr.mxu0 %v485
    %1041 = vmatpush2.msra.mxu0 %v484
    %1042 = vmatprep.subr.mxu0 %v483
    %1043 = vmatpush2.msra.mxu0 %v482
    %1044 = vmatprep.subr.mxu0 %v481
    %1045 = vmatpush2.msra.mxu0 %v480
    %1046 = vmatprep.subr.mxu0 %v479
    %1047 = vmatpush2.msra.mxu0 %v478
    %1048 = vmatprep.subr.mxu0 %v477
    %1049 = vmatpush2.msra.mxu0 %v476
    %1050 = vmatprep.subr.mxu0 %v475
    %1051 = vmatpush2.msra.mxu0 %v474
    %1052 = vmatprep.subr.mxu0 %v473
    %1053 = vmatpush2.msra.mxu0 %v472
    %1054 = vmatprep.subr.mxu0 %v471
    %1055 = vmatpush2.msra.mxu0 %v470
    %1056 = vmatprep.mubr.f32.mxu0 %v51
    %1057 = vmatmul.mubr.f32.gmra.mxu0 %v50
    %v1058 = vpop.f32.mrf.mxu0
    %v1059 = vadd.f32 %v988, %v1058
    %v1060 = vpop.f32.mrf.mxu0
    %v1061 = vadd.f32 %v990, %v1060
    %1062 = vdwg.mxu0
    %1063 = vmatprep.subr.mxu0 %v533
    %1064 = vmatpush1.msra.mxu0 %v532
    %1065 = vmatprep.subr.mxu0 %v531
    %1066 = vmatpush1.msra.mxu0 %v530
    %1067 = vmatprep.subr.mxu0 %v529
    %1068 = vmatpush1.msra.mxu0 %v528
    %1069 = vmatprep.subr.mxu0 %v527
    %1070 = vmatpush1.msra.mxu0 %v526
    %1071 = vmatprep.subr.mxu0 %v525
    %1072 = vmatpush1.msra.mxu0 %v524
    %1073 = vmatprep.subr.mxu0 %v523
    %1074 = vmatpush1.msra.mxu0 %v522
    %1075 = vmatprep.subr.mxu0 %v521
    %1076 = vmatpush1.msra.mxu0 %v520
    %1077 = vmatprep.subr.mxu0 %v519
    %1078 = vmatpush1.msra.mxu0 %v518
    %1079 = vmatprep.subr.mxu0 %v517
    %1080 = vmatpush1.msra.mxu0 %v516
    %1081 = vmatprep.subr.mxu0 %v515
    %1082 = vmatpush1.msra.mxu0 %v514
    %1083 = vmatprep.subr.mxu0 %v513
    %1084 = vmatpush1.msra.mxu0 %v512
    %1085 = vmatprep.subr.mxu0 %v511
    %1086 = vmatpush1.msra.mxu0 %v510
    %1087 = vmatprep.subr.mxu0 %v509
    %1088 = vmatpush1.msra.mxu0 %v508
    %1089 = vmatprep.subr.mxu0 %v507
    %1090 = vmatpush1.msra.mxu0 %v506
    %1091 = vmatprep.subr.mxu0 %v505
    %1092 = vmatpush1.msra.mxu0 %v504
    %1093 = vmatprep.subr.mxu0 %v503
    %1094 = vmatpush1.msra.mxu0 %v502
    %1095 = vmatprep.subr.mxu0 %v565
    %1096 = vmatpush2.msra.mxu0 %v564
    %1097 = vmatprep.subr.mxu0 %v563
    %1098 = vmatpush2.msra.mxu0 %v562
    %1099 = vmatprep.subr.mxu0 %v561
    %1100 = vmatpush2.msra.mxu0 %v560
    %1101 = vmatprep.subr.mxu0 %v559
    %1102 = vmatpush2.msra.mxu0 %v558
    %1103 = vmatprep.subr.mxu0 %v557
    %1104 = vmatpush2.msra.mxu0 %v556
    %1105 = vmatprep.subr.mxu0 %v555
    %1106 = vmatpush2.msra.mxu0 %v554
    %1107 = vmatprep.subr.mxu0 %v553
    %1108 = vmatpush2.msra.mxu0 %v552
    %1109 = vmatprep.subr.mxu0 %v551
    %1110 = vmatpush2.msra.mxu0 %v550
    %1111 = vmatprep.subr.mxu0 %v549
    %1112 = vmatpush2.msra.mxu0 %v548
    %1113 = vmatprep.subr.mxu0 %v547
    %1114 = vmatpush2.msra.mxu0 %v546
    %1115 = vmatprep.subr.mxu0 %v545
    %1116 = vmatpush2.msra.mxu0 %v544
    %1117 = vmatprep.subr.mxu0 %v543
    %1118 = vmatpush2.msra.mxu0 %v542
    %1119 = vmatprep.subr.mxu0 %v541
    %1120 = vmatpush2.msra.mxu0 %v540
    %1121 = vmatprep.subr.mxu0 %v539
    %1122 = vmatpush2.msra.mxu0 %v538
    %1123 = vmatprep.subr.mxu0 %v537
    %1124 = vmatpush2.msra.mxu0 %v536
    %1125 = vmatprep.subr.mxu0 %v535
    %1126 = vmatpush2.msra.mxu0 %v534
    %1127 = vmatprep.mubr.f32.mxu0 %v53
    %1128 = vmatmul.mubr.f32.gmra.mxu0 %v52
    %v1129 = vpop.f32.mrf.mxu0
    %v1130 = vadd.f32 %v1059, %v1129
    %v1131 = vpop.f32.mrf.mxu0
    %v1132 = vadd.f32 %v1061, %v1131
    %1133 = vdwg.mxu0
    %v1134 = vsub.f32 %v1130, 1.0
    %v1135 = vsub.f32 %v1132, 1.0
    %1136 = vst [vmem:[#allocation7] sm:$0xff] %v1134
    %1137 = vst [vmem:[#allocation7 + $0x8] sm:$0xff] %v1135
    // Predicated region
    $region18: #{tpu_custom_call.1} parent=1 // pred_check
      _
    $region19: #{tpu_custom_call.1} parent=1 // pred_check_branch
      %1139 = sbr.rel (0) target = $region21
    $region20: #{tpu_custom_call.1} parent=1 // pred_region
      %s1141 = ssub.s32 256, 256
      %1142 = vsyncadd [#allocation4], %s1141
      %s1144 = sshll.u32 [#allocation7], 4
      %s1145 = int_to_ptr.vmem [resolvable:$true] %s1144
      %1147 = dma.vmem_to_hbm [thread:$0]  %s1145, 256, %s2, [#allocation4]
    $region21: #{tpu_custom_call.1} parent=1 // pred_fallthru
      _
    // Predicated region
    $region22: #{tpu_custom_call.1} parent=1 // pred_check
      _
    $region23: #{tpu_custom_call.1} parent=1 // pred_check_branch
      %1149 = sbr.rel (0) target = $region25
    $region24: #{tpu_custom_call.1} parent=1 // pred_region
      %1150 = dma.done [#allocation4], 256
    $region25: #{tpu_custom_call.1} parent=1 // pred_fallthru
      _
    %1151 = vsyncpa [#allocation3], 1
    %1152 = vsyncpa [#allocation6], 1
    %1153 = vsyncpa [#allocation4], 1

</llo_original>
